<compile_context>
chip_gen: v7x
topology: tpu7x:2x2x1
jax: 0.10.0
libtpu: 0.0.40
codegen_flags: <defaults>
</compile_context>

<pallas_src>
import math
from functools import partial

import numpy as np
import jax
import jax.numpy as jnp
from jax.experimental import pallas as pl
from jax.experimental.pallas import tpu as pltpu

NUM_EXPERTS = 4
BN_EPS = 1e-5
K = 3  # depthwise kernel size


# ---------------------------- in-kernel helpers ----------------------------

def _routing(pooled_chunks, wr, br):
    """Routing Linear + sigmoid, vectorized over experts.

    pooled_chunks: list of (c_i, 1) arrays whose channel-concat is the pooled input.
    wr: (sum c_i, E); br: (1, E).  Returns the (1, E) routing weights.
    """
    logit = br
    off = 0
    for p in pooled_chunks:
        c = p.shape[0]
        logit = logit + jnp.sum(wr[off:off + c, :] * p, axis=0, keepdims=True)
        off += c
    return 1.0 / (1.0 + jnp.exp(-logit))


def _mix_experts(r, we, cout):
    """CondConv weight mixing: sum_e r_e * W_e.  we: (E*cout, k), BN-scale folded."""
    n_exp = r.shape[1]
    w = r[:, 0:1] * we[0:cout, :]
    for e in range(1, n_exp):
        w = w + r[:, e:e + 1] * we[e * cout:(e + 1) * cout, :]
    return w


def _pw_conv(chunks, w, shift, relu):
    """Dynamic 1x1 conv + folded-BN bias (+ optional ReLU) as VPU broadcast-FMAs.

    chunks: list of (c_i, HW) inputs (their channel-concat is Cin); w: (Cout, Cin);
    shift: (Cout, 1).  Accumulator starts from the first Cin term with bias folded in.
    """
    acc = w[:, 0:1] * chunks[0][0:1, :] + shift
    off = 0
    for x in chunks:
        for i in range(x.shape[0]):
            if off + i > 0:
                acc = acc + w[:, off + i:off + i + 1] * x[i:i + 1, :]
        off += x.shape[0]
    return jnp.maximum(acc, 0.0) if relu else acc


def _dw_conv(x, w, shift, mask, W, relu):
    """Dynamic depthwise 3x3 conv (zero pad 1) + folded-BN bias (+ optional ReLU).

    x: (C, HW) flattened image; w: (C, 9) BN-scaled mixed taps; shift: (C, 1);
    mask: (9, HW) 0/1 validity mask.  Every non-centre tap is an XLU lane-roll of x
    over the flattened HW axis; the mask zeroes all wrapped / out-of-image lanes,
    which is exactly equivalent to zero padding (and NaN-safe: wrapped lanes hold
    real finite x values before the 0-multiply).
    """
    hw = x.shape[1]
    # centre tap (kh = kw = 1): mask is all-ones, so fold it and the bias into init.
    acc = x * w[:, 4:5] + shift
    for kh in range(K):
        for kw in range(K):
            tap = kh * K + kw
            if tap == 4:
                continue
            s = (kh - 1) * W + (kw - 1)
            win = pltpu.roll(x, shift=(-s) % hw, axis=1)
            acc = acc + win * w[:, tap:tap + 1] * mask[tap:tap + 1, :]
    return jnp.maximum(acc, 0.0) if relu else acc


# ---------------------------- fused kernel ----------------------------

def _ghost_bottleneck_kernel(x_ref, slab_ref, out_ref, *,
                             layout, in_chs, out_chs, H, W, c1, c2):
    hw = H * W
    inv_hw = 1.0 / float(hw)
    mid = 2 * in_chs

    def P(name):                      # static sub-slice of the packed parameter slab
        r0, nr, nc = layout[name]
        return slab_ref[r0:r0 + nr, 0:nc]

    mask = P("mask")                                       # (9, HW)
    x = x_ref[...].astype(jnp.float32)                     # (in_chs, HW)

    # ---- ghost1.primary_conv: DynamicConv 1x1 -> BN -> ReLU ----
    px = jnp.sum(x, axis=1, keepdims=True) * inv_hw
    r = _routing([px], P("g1p_wr"), P("g1p_br"))
    w = _mix_experts(r, P("g1p_we"), c1)
    x1 = _pw_conv([x], w, P("g1p_sh"), relu=True)          # (c1, HW)

    # ---- ghost1.cheap_operation: DynamicConv dw3x3 -> BN -> ReLU ----
    p1 = jnp.sum(x1, axis=1, keepdims=True) * inv_hw
    r = _routing([p1], P("g1c_wr"), P("g1c_br"))
    w = _mix_experts(r, P("g1c_we"), c1)
    x2 = _dw_conv(x1, w, P("g1c_sh"), mask, W, relu=True)[0:mid - c1, :]

    # ---- ghost2.primary_conv: DynamicConv 1x1 -> BN (no act) ----
    p2 = jnp.sum(x2, axis=1, keepdims=True) * inv_hw
    r = _routing([p1, p2], P("g2p_wr"), P("g2p_br"))
    w = _mix_experts(r, P("g2p_we"), c2)
    y1 = _pw_conv([x1, x2], w, P("g2p_sh"), relu=False)    # (c2, HW)

    # ---- ghost2.cheap_operation: DynamicConv dw3x3 -> BN (no act) ----
    q1 = jnp.sum(y1, axis=1, keepdims=True) * inv_hw
    r = _routing([q1], P("g2c_wr"), P("g2c_br"))
    w = _mix_experts(r, P("g2c_we"), c2)
    y2 = _dw_conv(y1, w, P("g2c_sh"), mask, W, relu=False)[0:out_chs - c2, :]

    # ---- identity shortcut + drop_path(Identity): out = x + ghost2(ghost1(x)) ----
    ghost = jnp.concatenate([y1, y2], axis=0)              # (out_chs, HW)
    out_ref[...] = (x[0:out_chs, :] + ghost).astype(out_ref.dtype)   # one full store


# ---------------------------- wrapper ----------------------------

def _make_dw_mask_np(H, W, k=K):
    """(k*k, H*W) 0/1 mask: tap (kh,kw) valid at flat position h*W+w iff the
    zero-padded neighbour (h+kh-1, w+kw-1) lies inside the image."""
    hh, ww = np.meshgrid(np.arange(H), np.arange(W), indexing="ij")
    rows = []
    for kh in range(k):
        for kw in range(k):
            v = ((hh + kh - 1 >= 0) & (hh + kh - 1 < H) &
                 (ww + kw - 1 >= 0) & (ww + kw - 1 < W))
            rows.append(v.reshape(-1).astype(np.float32))
    return np.stack(rows, axis=0)


def _pack_params(params, H, W):
    """Pack every conv parameter (+ the dw pad mask) into one pre-padded f32 slab.

    BN scale is folded into the expert weights here; only the BN shift survives as
    an in-kernel bias.  Returns (slab of shape (rows, H*W), layout name->(r0, nr, nc)).
    """
    lanes = H * W
    pieces, layout = [], {}
    cur = 0

    def add(name, arr):
        nonlocal cur
        arr = np.asarray(arr, np.float32)
        assert arr.ndim == 2 and arr.shape[1] <= lanes, (name, arr.shape)
        layout[name] = (cur, arr.shape[0], arr.shape[1])
        buf = np.zeros((arr.shape[0], lanes), np.float32)
        buf[:, :arr.shape[1]] = arr
        pieces.append(buf)
        cur += arr.shape[0]

    add("mask", _make_dw_mask_np(H, W))
    for gname, tag in (("ghost1", "g1"), ("ghost2", "g2")):
        for part, suf in (("primary", "p"), ("cheap", "c")):
            p = params[gname][part]
            pre = tag + suf
            wexp = np.asarray(p["wexp"], np.float32)           # (E, cout, k)
            scale = np.asarray(p["scale"], np.float32)         # (cout, 1)
            wexp_sc = wexp * scale[None, :, :]                 # exact BN-scale fold
            n_exp, cout, kk = wexp_sc.shape
            add(pre + "_wr", p["wr"])
            add(pre + "_br", p["br"])
            add(pre + "_we", wexp_sc.reshape(n_exp * cout, kk))
            add(pre + "_sh", p["shift"])

    pad = (-cur) % 8
    if pad:
        pieces.append(np.zeros((pad, lanes), np.float32))
    return jnp.asarray(np.concatenate(pieces, axis=0)), layout


def make_ghost_bottleneck(params, in_chs, out_chs, H, W):
    hw = H * W
    mid = 2 * in_chs
    c1 = int(params["ghost1"]["primary"]["wexp"].shape[1])    # ghost1 init channels
    c2 = int(params["ghost2"]["primary"]["wexp"].shape[1])    # ghost2 init channels
    assert 2 * c1 >= mid and 2 * c2 >= out_chs
    assert in_chs == out_chs, "identity shortcut requires in_chs == out_chs"

    slab, layout = _pack_params(params, H, W)
    kernel = partial(_ghost_bottleneck_kernel, layout=layout, in_chs=in_chs,
                     out_chs=out_chs, H=H, W=W, c1=c1, c2=c2)

    def fwd(x_nchw):
        B, C, Hh, Ww = x_nchw.shape
        assert (C, Hh, Ww) == (in_chs, H, W)
        x3d = x_nchw.reshape(B, in_chs, hw)          # NCHW kept; HW on the lane axis
        out3d = pl.pallas_call(
            kernel,
            out_shape=jax.ShapeDtypeStruct((B, out_chs, hw), x_nchw.dtype),
            grid=(B,),
            in_specs=[
                pl.BlockSpec((None, in_chs, hw), lambda b: (b, 0, 0)),
                pl.BlockSpec(slab.shape, lambda b: (0, 0)),      # resident param slab
            ],
            out_specs=pl.BlockSpec((None, out_chs, hw), lambda b: (b, 0, 0)),
            compiler_params=pltpu.CompilerParams(
                dimension_semantics=("parallel",)),
        )(x3d, slab)
        return out3d.reshape(B, out_chs, Hh, Ww)

    return jax.jit(fwd)


# ---------------------------- parameter init ----------------------------

def _fold_bn(keys, c):
    gamma = 1.0 + 0.1 * jax.random.normal(keys[0], (c, 1), jnp.float32)
    beta = 0.1 * jax.random.normal(keys[1], (c, 1), jnp.float32)
    mean = 0.1 * jax.random.normal(keys[2], (c, 1), jnp.float32)
    var = 1.0 + 0.5 * jax.random.uniform(keys[3], (c, 1), jnp.float32)
    scale = gamma / jnp.sqrt(var + BN_EPS)
    shift = beta - mean * scale
    return scale, shift


def init_dyn_pw(key, cin, cout, num_experts=NUM_EXPERTS):
    ks = jax.random.split(key, 7)
    bound = 1.0 / math.sqrt(cin)
    wr = jax.random.uniform(ks[0], (cin, num_experts), jnp.float32, -bound, bound)
    br = jax.random.uniform(ks[1], (1, num_experts), jnp.float32, -bound, bound)
    wexp = jax.random.normal(ks[2], (num_experts, cout, cin), jnp.float32) / math.sqrt(cin)
    scale, shift = _fold_bn(ks[3:], cout)
    return dict(wr=wr, br=br, wexp=wexp, scale=scale, shift=shift)


def init_dyn_dw(key, c, k=K, num_experts=NUM_EXPERTS):
    ks = jax.random.split(key, 7)
    bound = 1.0 / math.sqrt(c)
    wr = jax.random.uniform(ks[0], (c, num_experts), jnp.float32, -bound, bound)
    br = jax.random.uniform(ks[1], (1, num_experts), jnp.float32, -bound, bound)
    wexp = jax.random.normal(ks[2], (num_experts, c, k * k), jnp.float32) / float(k)
    scale, shift = _fold_bn(ks[3:], c)
    return dict(wr=wr, br=br, wexp=wexp, scale=scale, shift=shift)


def init_ghost_bottleneck(key, in_chs, out_chs):
    mid_chs = in_chs * 2
    k1, k2, k3, k4 = jax.random.split(key, 4)
    g1_init = math.ceil(mid_chs / 2)     # GhostModule(in, mid): init = mid/2
    g2_init = math.ceil(out_chs / 2)     # GhostModule(mid, out): init = out/2
    return dict(
        ghost1=dict(primary=init_dyn_pw(k1, in_chs, g1_init),
                    cheap=init_dyn_dw(k2, g1_init)),
        ghost2=dict(primary=init_dyn_pw(k3, mid_chs, g2_init),
                    cheap=init_dyn_dw(k4, g2_init)),
    )


# ---------------------------- main ----------------------------

if __name__ == "__main__":
    key = jax.random.PRNGKey(0)
    kx, kp = jax.random.split(key)

    B, C, H, W = 2, 4, 16, 16          # in_chs == out_chs == 4, stride == 1
    x = jax.random.normal(kx, (B, C, H, W), jnp.float32)   # NCHW, like PyTorch

    params = init_ghost_bottleneck(kp, in_chs=C, out_chs=C)
    ghost_bottleneck = make_ghost_bottleneck(params, in_chs=C, out_chs=C, H=H, W=W)

    out = jax.block_until_ready(ghost_bottleneck(x))

    assert out.shape == (B, C, H, W), out.shape
    assert out.dtype == jnp.float32
    assert bool(jnp.all(jnp.isfinite(out)))
    print("KERNEL_OK")
</pallas_src>

<mosaic_0001>
module attributes {stable_mosaic.version = 11 : i64} {
  func.func @_ghost_bottleneck_kernel(%arg0: i32, %arg1: memref<1x4x256xf32, #tpu.memory_space<vmem>>, %arg2: memref<96x256xf32, #tpu.memory_space<vmem>>, %arg3: memref<1x4x256xf32, #tpu.memory_space<vmem>>) attributes {dimension_semantics = [#tpu.dimension_semantics<parallel>], iteration_bounds = array<i64: 2>, scalar_prefetch = 0 : i64, scratch_operands = 0 : i64, tpu.core_type = #tpu.core_type<tc>, window_params = [{transform_indices = @transform_0, window_bounds = array<i64: 1, 4, 256>}, {pipeline_mode = #tpu.pipeline_mode<synchronous>, transform_indices = @transform_1, window_bounds = array<i64: 96, 256>}, {transform_indices = @transform_2, window_bounds = array<i64: 1, 4, 256>}]} {
    %c0 = arith.constant 0 : index
    %c0_0 = arith.constant 0 : index
    %0 = vector.load %arg2[%c0, %c0_0] : memref<96x256xf32, #tpu.memory_space<vmem>>, vector<9x256xf32>
    %c0_1 = arith.constant 0 : index
    %c0_2 = arith.constant 0 : index
    %c0_3 = arith.constant 0 : index
    %1 = vector.load %arg1[%c0_1, %c0_2, %c0_3] : memref<1x4x256xf32, #tpu.memory_space<vmem>>, vector<1x4x256xf32>
    %2 = vector.shape_cast %1 : vector<1x4x256xf32> to vector<4x256xf32>
    %cst = arith.constant dense<0.000000e+00> : vector<4xf32>
    %3 = vector.multi_reduction <add>, %2, %cst [1] : vector<4x256xf32> to vector<4xf32>
    %4 = vector.shape_cast %3 : vector<4xf32> to vector<4x1xf32>
    %cst_4 = arith.constant 3.906250e-03 : f32
    %5 = vector.broadcast %cst_4 : f32 to vector<4x1xf32>
    %6 = arith.mulf %4, %5 : vector<4x1xf32>
    %c9 = arith.constant 9 : index
    %c0_5 = arith.constant 0 : index
    %7 = vector.load %arg2[%c9, %c0_5] : memref<96x256xf32, #tpu.memory_space<vmem>>, vector<4x4xf32>
    %c13 = arith.constant 13 : index
    %c0_6 = arith.constant 0 : index
    %8 = vector.load %arg2[%c13, %c0_6] : memref<96x256xf32, #tpu.memory_space<vmem>>, vector<1x4xf32>
    %9 = vector.broadcast %6 : vector<4x1xf32> to vector<4x4xf32>
    %10 = arith.mulf %7, %9 : vector<4x4xf32>
    %cst_7 = arith.constant dense<0.000000e+00> : vector<4xf32>
    %11 = vector.multi_reduction <add>, %10, %cst_7 [0] : vector<4x4xf32> to vector<4xf32>
    %12 = vector.shape_cast %11 : vector<4xf32> to vector<1x4xf32>
    %13 = arith.addf %8, %12 : vector<1x4xf32>
    %cst_8 = arith.constant 0.000000e+00 : f32
    %14 = vector.broadcast %cst_8 : f32 to vector<1x4xf32>
    %15 = arith.subf %14, %13 : vector<1x4xf32>
    %16 = math.exp %15 : vector<1x4xf32>
    %cst_9 = arith.constant 1.000000e+00 : f32
    %17 = vector.broadcast %cst_9 : f32 to vector<1x4xf32>
    %18 = arith.addf %17, %16 : vector<1x4xf32>
    %cst_10 = arith.constant 1.000000e+00 : f32
    %19 = vector.broadcast %cst_10 : f32 to vector<1x4xf32>
    %20 = arith.divf %19, %18 : vector<1x4xf32>
    %c14 = arith.constant 14 : index
    %c0_11 = arith.constant 0 : index
    %21 = vector.load %arg2[%c14, %c0_11] : memref<96x256xf32, #tpu.memory_space<vmem>>, vector<16x4xf32>
    %22 = vector.extract_strided_slice %20 {offsets = [0, 0], sizes = [1, 1], strides = [1, 1]} : vector<1x4xf32> to vector<1x1xf32>
    %23 = vector.extract_strided_slice %21 {offsets = [0, 0], sizes = [4, 4], strides = [1, 1]} : vector<16x4xf32> to vector<4x4xf32>
    %24 = vector.broadcast %22 : vector<1x1xf32> to vector<4x4xf32>
    %25 = arith.mulf %24, %23 : vector<4x4xf32>
    %26 = vector.extract_strided_slice %20 {offsets = [0, 1], sizes = [1, 1], strides = [1, 1]} : vector<1x4xf32> to vector<1x1xf32>
    %27 = vector.extract_strided_slice %21 {offsets = [4, 0], sizes = [4, 4], strides = [1, 1]} : vector<16x4xf32> to vector<4x4xf32>
    %28 = vector.broadcast %26 : vector<1x1xf32> to vector<4x4xf32>
    %29 = arith.mulf %28, %27 : vector<4x4xf32>
    %30 = arith.addf %25, %29 : vector<4x4xf32>
    %31 = vector.extract_strided_slice %20 {offsets = [0, 2], sizes = [1, 1], strides = [1, 1]} : vector<1x4xf32> to vector<1x1xf32>
    %32 = vector.extract_strided_slice %21 {offsets = [8, 0], sizes = [4, 4], strides = [1, 1]} : vector<16x4xf32> to vector<4x4xf32>
    %33 = vector.broadcast %31 : vector<1x1xf32> to vector<4x4xf32>
    %34 = arith.mulf %33, %32 : vector<4x4xf32>
    %35 = arith.addf %30, %34 : vector<4x4xf32>
    %36 = vector.extract_strided_slice %20 {offsets = [0, 3], sizes = [1, 1], strides = [1, 1]} : vector<1x4xf32> to vector<1x1xf32>
    %37 = vector.extract_strided_slice %21 {offsets = [12, 0], sizes = [4, 4], strides = [1, 1]} : vector<16x4xf32> to vector<4x4xf32>
    %38 = vector.broadcast %36 : vector<1x1xf32> to vector<4x4xf32>
    %39 = arith.mulf %38, %37 : vector<4x4xf32>
    %40 = arith.addf %35, %39 : vector<4x4xf32>
    %c30 = arith.constant 30 : index
    %c0_12 = arith.constant 0 : index
    %41 = vector.load %arg2[%c30, %c0_12] : memref<96x256xf32, #tpu.memory_space<vmem>>, vector<4x1xf32>
    %42 = vector.extract_strided_slice %40 {offsets = [0, 0], sizes = [4, 1], strides = [1, 1]} : vector<4x4xf32> to vector<4x1xf32>
    %43 = vector.extract_strided_slice %2 {offsets = [0, 0], sizes = [1, 256], strides = [1, 1]} : vector<4x256xf32> to vector<1x256xf32>
    %44 = vector.broadcast %42 : vector<4x1xf32> to vector<4x256xf32>
    %45 = vector.broadcast %43 : vector<1x256xf32> to vector<4x256xf32>
    %46 = arith.mulf %44, %45 : vector<4x256xf32>
    %47 = vector.broadcast %41 : vector<4x1xf32> to vector<4x256xf32>
    %48 = arith.addf %46, %47 : vector<4x256xf32>
    %49 = vector.extract_strided_slice %40 {offsets = [0, 1], sizes = [4, 1], strides = [1, 1]} : vector<4x4xf32> to vector<4x1xf32>
    %50 = vector.extract_strided_slice %2 {offsets = [1, 0], sizes = [1, 256], strides = [1, 1]} : vector<4x256xf32> to vector<1x256xf32>
    %51 = vector.broadcast %49 : vector<4x1xf32> to vector<4x256xf32>
    %52 = vector.broadcast %50 : vector<1x256xf32> to vector<4x256xf32>
    %53 = arith.mulf %51, %52 : vector<4x256xf32>
    %54 = arith.addf %48, %53 : vector<4x256xf32>
    %55 = vector.extract_strided_slice %40 {offsets = [0, 2], sizes = [4, 1], strides = [1, 1]} : vector<4x4xf32> to vector<4x1xf32>
    %56 = vector.extract_strided_slice %2 {offsets = [2, 0], sizes = [1, 256], strides = [1, 1]} : vector<4x256xf32> to vector<1x256xf32>
    %57 = vector.broadcast %55 : vector<4x1xf32> to vector<4x256xf32>
    %58 = vector.broadcast %56 : vector<1x256xf32> to vector<4x256xf32>
    %59 = arith.mulf %57, %58 : vector<4x256xf32>
    %60 = arith.addf %54, %59 : vector<4x256xf32>
    %61 = vector.extract_strided_slice %40 {offsets = [0, 3], sizes = [4, 1], strides = [1, 1]} : vector<4x4xf32> to vector<4x1xf32>
    %62 = vector.extract_strided_slice %2 {offsets = [3, 0], sizes = [1, 256], strides = [1, 1]} : vector<4x256xf32> to vector<1x256xf32>
    %63 = vector.broadcast %61 : vector<4x1xf32> to vector<4x256xf32>
    %64 = vector.broadcast %62 : vector<1x256xf32> to vector<4x256xf32>
    %65 = arith.mulf %63, %64 : vector<4x256xf32>
    %66 = arith.addf %60, %65 : vector<4x256xf32>
    %cst_13 = arith.constant 0.000000e+00 : f32
    %67 = vector.broadcast %cst_13 : f32 to vector<4x256xf32>
    %68 = arith.maximumf %66, %67 : vector<4x256xf32>
    %cst_14 = arith.constant dense<0.000000e+00> : vector<4xf32>
    %69 = vector.multi_reduction <add>, %68, %cst_14 [1] : vector<4x256xf32> to vector<4xf32>
    %70 = vector.shape_cast %69 : vector<4xf32> to vector<4x1xf32>
    %cst_15 = arith.constant 3.906250e-03 : f32
    %71 = vector.broadcast %cst_15 : f32 to vector<4x1xf32>
    %72 = arith.mulf %70, %71 : vector<4x1xf32>
    %c34 = arith.constant 34 : index
    %c0_16 = arith.constant 0 : index
    %73 = vector.load %arg2[%c34, %c0_16] : memref<96x256xf32, #tpu.memory_space<vmem>>, vector<4x4xf32>
    %c38 = arith.constant 38 : index
    %c0_17 = arith.constant 0 : index
    %74 = vector.load %arg2[%c38, %c0_17] : memref<96x256xf32, #tpu.memory_space<vmem>>, vector<1x4xf32>
    %75 = vector.broadcast %72 : vector<4x1xf32> to vector<4x4xf32>
    %76 = arith.mulf %73, %75 : vector<4x4xf32>
    %cst_18 = arith.constant dense<0.000000e+00> : vector<4xf32>
    %77 = vector.multi_reduction <add>, %76, %cst_18 [0] : vector<4x4xf32> to vector<4xf32>
    %78 = vector.shape_cast %77 : vector<4xf32> to vector<1x4xf32>
    %79 = arith.addf %74, %78 : vector<1x4xf32>
    %cst_19 = arith.constant 0.000000e+00 : f32
    %80 = vector.broadcast %cst_19 : f32 to vector<1x4xf32>
    %81 = arith.subf %80, %79 : vector<1x4xf32>
    %82 = math.exp %81 : vector<1x4xf32>
    %cst_20 = arith.constant 1.000000e+00 : f32
    %83 = vector.broadcast %cst_20 : f32 to vector<1x4xf32>
    %84 = arith.addf %83, %82 : vector<1x4xf32>
    %cst_21 = arith.constant 1.000000e+00 : f32
    %85 = vector.broadcast %cst_21 : f32 to vector<1x4xf32>
    %86 = arith.divf %85, %84 : vector<1x4xf32>
    %c39 = arith.constant 39 : index
    %c0_22 = arith.constant 0 : index
    %87 = vector.load %arg2[%c39, %c0_22] : memref<96x256xf32, #tpu.memory_space<vmem>>, vector<16x9xf32>
    %88 = vector.extract_strided_slice %86 {offsets = [0, 0], sizes = [1, 1], strides = [1, 1]} : vector<1x4xf32> to vector<1x1xf32>
    %89 = vector.extract_strided_slice %87 {offsets = [0, 0], sizes = [4, 9], strides = [1, 1]} : vector<16x9xf32> to vector<4x9xf32>
    %90 = vector.broadcast %88 : vector<1x1xf32> to vector<4x9xf32>
    %91 = arith.mulf %90, %89 : vector<4x9xf32>
    %92 = vector.extract_strided_slice %86 {offsets = [0, 1], sizes = [1, 1], strides = [1, 1]} : vector<1x4xf32> to vector<1x1xf32>
    %93 = vector.extract_strided_slice %87 {offsets = [4, 0], sizes = [4, 9], strides = [1, 1]} : vector<16x9xf32> to vector<4x9xf32>
    %94 = vector.broadcast %92 : vector<1x1xf32> to vector<4x9xf32>
    %95 = arith.mulf %94, %93 : vector<4x9xf32>
    %96 = arith.addf %91, %95 : vector<4x9xf32>
    %97 = vector.extract_strided_slice %86 {offsets = [0, 2], sizes = [1, 1], strides = [1, 1]} : vector<1x4xf32> to vector<1x1xf32>
    %98 = vector.extract_strided_slice %87 {offsets = [8, 0], sizes = [4, 9], strides = [1, 1]} : vector<16x9xf32> to vector<4x9xf32>
    %99 = vector.broadcast %97 : vector<1x1xf32> to vector<4x9xf32>
    %100 = arith.mulf %99, %98 : vector<4x9xf32>
    %101 = arith.addf %96, %100 : vector<4x9xf32>
    %102 = vector.extract_strided_slice %86 {offsets = [0, 3], sizes = [1, 1], strides = [1, 1]} : vector<1x4xf32> to vector<1x1xf32>
    %103 = vector.extract_strided_slice %87 {offsets = [12, 0], sizes = [4, 9], strides = [1, 1]} : vector<16x9xf32> to vector<4x9xf32>
    %104 = vector.broadcast %102 : vector<1x1xf32> to vector<4x9xf32>
    %105 = arith.mulf %104, %103 : vector<4x9xf32>
    %106 = arith.addf %101, %105 : vector<4x9xf32>
    %c55 = arith.constant 55 : index
    %c0_23 = arith.constant 0 : index
    %107 = vector.load %arg2[%c55, %c0_23] : memref<96x256xf32, #tpu.memory_space<vmem>>, vector<4x1xf32>
    %108 = vector.extract_strided_slice %106 {offsets = [0, 4], sizes = [4, 1], strides = [1, 1]} : vector<4x9xf32> to vector<4x1xf32>
    %109 = vector.broadcast %108 : vector<4x1xf32> to vector<4x256xf32>
    %110 = arith.mulf %68, %109 : vector<4x256xf32>
    %111 = vector.broadcast %107 : vector<4x1xf32> to vector<4x256xf32>
    %112 = arith.addf %110, %111 : vector<4x256xf32>
    %c17_i32 = arith.constant 17 : i32
    %113 = tpu.dynamic_rotate %68 by %c17_i32 dim 1 : vector<4x256xf32>, i32 -> vector<4x256xf32>
    %114 = vector.extract_strided_slice %106 {offsets = [0, 0], sizes = [4, 1], strides = [1, 1]} : vector<4x9xf32> to vector<4x1xf32>
    %115 = vector.broadcast %114 : vector<4x1xf32> to vector<4x256xf32>
    %116 = arith.mulf %113, %115 : vector<4x256xf32>
    %117 = vector.extract_strided_slice %0 {offsets = [0, 0], sizes = [1, 256], strides = [1, 1]} : vector<9x256xf32> to vector<1x256xf32>
    %118 = vector.broadcast %117 : vector<1x256xf32> to vector<4x256xf32>
    %119 = arith.mulf %116, %118 : vector<4x256xf32>
    %120 = arith.addf %112, %119 : vector<4x256xf32>
    %c16_i32 = arith.constant 16 : i32
    %121 = tpu.dynamic_rotate %68 by %c16_i32 dim 1 : vector<4x256xf32>, i32 -> vector<4x256xf32>
    %122 = vector.extract_strided_slice %106 {offsets = [0, 1], sizes = [4, 1], strides = [1, 1]} : vector<4x9xf32> to vector<4x1xf32>
    %123 = vector.broadcast %122 : vector<4x1xf32> to vector<4x256xf32>
    %124 = arith.mulf %121, %123 : vector<4x256xf32>
    %125 = vector.extract_strided_slice %0 {offsets = [1, 0], sizes = [1, 256], strides = [1, 1]} : vector<9x256xf32> to vector<1x256xf32>
    %126 = vector.broadcast %125 : vector<1x256xf32> to vector<4x256xf32>
    %127 = arith.mulf %124, %126 : vector<4x256xf32>
    %128 = arith.addf %120, %127 : vector<4x256xf32>
    %c15_i32 = arith.constant 15 : i32
    %129 = tpu.dynamic_rotate %68 by %c15_i32 dim 1 : vector<4x256xf32>, i32 -> vector<4x256xf32>
    %130 = vector.extract_strided_slice %106 {offsets = [0, 2], sizes = [4, 1], strides = [1, 1]} : vector<4x9xf32> to vector<4x1xf32>
    %131 = vector.broadcast %130 : vector<4x1xf32> to vector<4x256xf32>
    %132 = arith.mulf %129, %131 : vector<4x256xf32>
    %133 = vector.extract_strided_slice %0 {offsets = [2, 0], sizes = [1, 256], strides = [1, 1]} : vector<9x256xf32> to vector<1x256xf32>
    %134 = vector.broadcast %133 : vector<1x256xf32> to vector<4x256xf32>
    %135 = arith.mulf %132, %134 : vector<4x256xf32>
    %136 = arith.addf %128, %135 : vector<4x256xf32>
    %c1_i32 = arith.constant 1 : i32
    %137 = tpu.dynamic_rotate %68 by %c1_i32 dim 1 : vector<4x256xf32>, i32 -> vector<4x256xf32>
    %138 = vector.extract_strided_slice %106 {offsets = [0, 3], sizes = [4, 1], strides = [1, 1]} : vector<4x9xf32> to vector<4x1xf32>
    %139 = vector.broadcast %138 : vector<4x1xf32> to vector<4x256xf32>
    %140 = arith.mulf %137, %139 : vector<4x256xf32>
    %141 = vector.extract_strided_slice %0 {offsets = [3, 0], sizes = [1, 256], strides = [1, 1]} : vector<9x256xf32> to vector<1x256xf32>
    %142 = vector.broadcast %141 : vector<1x256xf32> to vector<4x256xf32>
    %143 = arith.mulf %140, %142 : vector<4x256xf32>
    %144 = arith.addf %136, %143 : vector<4x256xf32>
    %c255_i32 = arith.constant 255 : i32
    %145 = tpu.dynamic_rotate %68 by %c255_i32 dim 1 : vector<4x256xf32>, i32 -> vector<4x256xf32>
    %146 = vector.extract_strided_slice %106 {offsets = [0, 5], sizes = [4, 1], strides = [1, 1]} : vector<4x9xf32> to vector<4x1xf32>
    %147 = vector.broadcast %146 : vector<4x1xf32> to vector<4x256xf32>
    %148 = arith.mulf %145, %147 : vector<4x256xf32>
    %149 = vector.extract_strided_slice %0 {offsets = [5, 0], sizes = [1, 256], strides = [1, 1]} : vector<9x256xf32> to vector<1x256xf32>
    %150 = vector.broadcast %149 : vector<1x256xf32> to vector<4x256xf32>
    %151 = arith.mulf %148, %150 : vector<4x256xf32>
    %152 = arith.addf %144, %151 : vector<4x256xf32>
    %c241_i32 = arith.constant 241 : i32
    %153 = tpu.dynamic_rotate %68 by %c241_i32 dim 1 : vector<4x256xf32>, i32 -> vector<4x256xf32>
    %154 = vector.extract_strided_slice %106 {offsets = [0, 6], sizes = [4, 1], strides = [1, 1]} : vector<4x9xf32> to vector<4x1xf32>
    %155 = vector.broadcast %154 : vector<4x1xf32> to vector<4x256xf32>
    %156 = arith.mulf %153, %155 : vector<4x256xf32>
    %157 = vector.extract_strided_slice %0 {offsets = [6, 0], sizes = [1, 256], strides = [1, 1]} : vector<9x256xf32> to vector<1x256xf32>
    %158 = vector.broadcast %157 : vector<1x256xf32> to vector<4x256xf32>
    %159 = arith.mulf %156, %158 : vector<4x256xf32>
    %160 = arith.addf %152, %159 : vector<4x256xf32>
    %c240_i32 = arith.constant 240 : i32
    %161 = tpu.dynamic_rotate %68 by %c240_i32 dim 1 : vector<4x256xf32>, i32 -> vector<4x256xf32>
    %162 = vector.extract_strided_slice %106 {offsets = [0, 7], sizes = [4, 1], strides = [1, 1]} : vector<4x9xf32> to vector<4x1xf32>
    %163 = vector.broadcast %162 : vector<4x1xf32> to vector<4x256xf32>
    %164 = arith.mulf %161, %163 : vector<4x256xf32>
    %165 = vector.extract_strided_slice %0 {offsets = [7, 0], sizes = [1, 256], strides = [1, 1]} : vector<9x256xf32> to vector<1x256xf32>
    %166 = vector.broadcast %165 : vector<1x256xf32> to vector<4x256xf32>
    %167 = arith.mulf %164, %166 : vector<4x256xf32>
    %168 = arith.addf %160, %167 : vector<4x256xf32>
    %c239_i32 = arith.constant 239 : i32
    %169 = tpu.dynamic_rotate %68 by %c239_i32 dim 1 : vector<4x256xf32>, i32 -> vector<4x256xf32>
    %170 = vector.extract_strided_slice %106 {offsets = [0, 8], sizes = [4, 1], strides = [1, 1]} : vector<4x9xf32> to vector<4x1xf32>
    %171 = vector.broadcast %170 : vector<4x1xf32> to vector<4x256xf32>
    %172 = arith.mulf %169, %171 : vector<4x256xf32>
    %173 = vector.extract_strided_slice %0 {offsets = [8, 0], sizes = [1, 256], strides = [1, 1]} : vector<9x256xf32> to vector<1x256xf32>
    %174 = vector.broadcast %173 : vector<1x256xf32> to vector<4x256xf32>
    %175 = arith.mulf %172, %174 : vector<4x256xf32>
    %176 = arith.addf %168, %175 : vector<4x256xf32>
    %cst_24 = arith.constant 0.000000e+00 : f32
    %177 = vector.broadcast %cst_24 : f32 to vector<4x256xf32>
    %178 = arith.maximumf %176, %177 : vector<4x256xf32>
    %cst_25 = arith.constant dense<0.000000e+00> : vector<4xf32>
    %179 = vector.multi_reduction <add>, %178, %cst_25 [1] : vector<4x256xf32> to vector<4xf32>
    %180 = vector.shape_cast %179 : vector<4xf32> to vector<4x1xf32>
    %cst_26 = arith.constant 3.906250e-03 : f32
    %181 = vector.broadcast %cst_26 : f32 to vector<4x1xf32>
    %182 = arith.mulf %180, %181 : vector<4x1xf32>
    %c59 = arith.constant 59 : index
    %c0_27 = arith.constant 0 : index
    %183 = vector.load %arg2[%c59, %c0_27] : memref<96x256xf32, #tpu.memory_space<vmem>>, vector<8x4xf32>
    %c67 = arith.constant 67 : index
    %c0_28 = arith.constant 0 : index
    %184 = vector.load %arg2[%c67, %c0_28] : memref<96x256xf32, #tpu.memory_space<vmem>>, vector<1x4xf32>
    %185 = vector.extract_strided_slice %183 {offsets = [0, 0], sizes = [4, 4], strides = [1, 1]} : vector<8x4xf32> to vector<4x4xf32>
    %186 = vector.broadcast %72 : vector<4x1xf32> to vector<4x4xf32>
    %187 = arith.mulf %185, %186 : vector<4x4xf32>
    %cst_29 = arith.constant dense<0.000000e+00> : vector<4xf32>
    %188 = vector.multi_reduction <add>, %187, %cst_29 [0] : vector<4x4xf32> to vector<4xf32>
    %189 = vector.shape_cast %188 : vector<4xf32> to vector<1x4xf32>
    %190 = arith.addf %184, %189 : vector<1x4xf32>
    %191 = vector.extract_strided_slice %183 {offsets = [4, 0], sizes = [4, 4], strides = [1, 1]} : vector<8x4xf32> to vector<4x4xf32>
    %192 = vector.broadcast %182 : vector<4x1xf32> to vector<4x4xf32>
    %193 = arith.mulf %191, %192 : vector<4x4xf32>
    %cst_30 = arith.constant dense<0.000000e+00> : vector<4xf32>
    %194 = vector.multi_reduction <add>, %193, %cst_30 [0] : vector<4x4xf32> to vector<4xf32>
    %195 = vector.shape_cast %194 : vector<4xf32> to vector<1x4xf32>
    %196 = arith.addf %190, %195 : vector<1x4xf32>
    %cst_31 = arith.constant 0.000000e+00 : f32
    %197 = vector.broadcast %cst_31 : f32 to vector<1x4xf32>
    %198 = arith.subf %197, %196 : vector<1x4xf32>
    %199 = math.exp %198 : vector<1x4xf32>
    %cst_32 = arith.constant 1.000000e+00 : f32
    %200 = vector.broadcast %cst_32 : f32 to vector<1x4xf32>
    %201 = arith.addf %200, %199 : vector<1x4xf32>
    %cst_33 = arith.constant 1.000000e+00 : f32
    %202 = vector.broadcast %cst_33 : f32 to vector<1x4xf32>
    %203 = arith.divf %202, %201 : vector<1x4xf32>
    %c68 = arith.constant 68 : index
    %c0_34 = arith.constant 0 : index
    %204 = vector.load %arg2[%c68, %c0_34] : memref<96x256xf32, #tpu.memory_space<vmem>>, vector<8x8xf32>
    %205 = vector.extract_strided_slice %203 {offsets = [0, 0], sizes = [1, 1], strides = [1, 1]} : vector<1x4xf32> to vector<1x1xf32>
    %206 = vector.extract_strided_slice %204 {offsets = [0, 0], sizes = [2, 8], strides = [1, 1]} : vector<8x8xf32> to vector<2x8xf32>
    %207 = vector.broadcast %205 : vector<1x1xf32> to vector<2x8xf32>
    %208 = arith.mulf %207, %206 : vector<2x8xf32>
    %209 = vector.extract_strided_slice %203 {offsets = [0, 1], sizes = [1, 1], strides = [1, 1]} : vector<1x4xf32> to vector<1x1xf32>
    %210 = vector.extract_strided_slice %204 {offsets = [2, 0], sizes = [2, 8], strides = [1, 1]} : vector<8x8xf32> to vector<2x8xf32>
    %211 = vector.broadcast %209 : vector<1x1xf32> to vector<2x8xf32>
    %212 = arith.mulf %211, %210 : vector<2x8xf32>
    %213 = arith.addf %208, %212 : vector<2x8xf32>
    %214 = vector.extract_strided_slice %203 {offsets = [0, 2], sizes = [1, 1], strides = [1, 1]} : vector<1x4xf32> to vector<1x1xf32>
    %215 = vector.extract_strided_slice %204 {offsets = [4, 0], sizes = [2, 8], strides = [1, 1]} : vector<8x8xf32> to vector<2x8xf32>
    %216 = vector.broadcast %214 : vector<1x1xf32> to vector<2x8xf32>
    %217 = arith.mulf %216, %215 : vector<2x8xf32>
    %218 = arith.addf %213, %217 : vector<2x8xf32>
    %219 = vector.extract_strided_slice %203 {offsets = [0, 3], sizes = [1, 1], strides = [1, 1]} : vector<1x4xf32> to vector<1x1xf32>
    %220 = vector.extract_strided_slice %204 {offsets = [6, 0], sizes = [2, 8], strides = [1, 1]} : vector<8x8xf32> to vector<2x8xf32>
    %221 = vector.broadcast %219 : vector<1x1xf32> to vector<2x8xf32>
    %222 = arith.mulf %221, %220 : vector<2x8xf32>
    %223 = arith.addf %218, %222 : vector<2x8xf32>
    %c76 = arith.constant 76 : index
    %c0_35 = arith.constant 0 : index
    %224 = vector.load %arg2[%c76, %c0_35] : memref<96x256xf32, #tpu.memory_space<vmem>>, vector<2x1xf32>
    %225 = vector.extract_strided_slice %223 {offsets = [0, 0], sizes = [2, 1], strides = [1, 1]} : vector<2x8xf32> to vector<2x1xf32>
    %226 = vector.extract_strided_slice %68 {offsets = [0, 0], sizes = [1, 256], strides = [1, 1]} : vector<4x256xf32> to vector<1x256xf32>
    %227 = vector.broadcast %225 : vector<2x1xf32> to vector<2x256xf32>
    %228 = vector.broadcast %226 : vector<1x256xf32> to vector<2x256xf32>
    %229 = arith.mulf %227, %228 : vector<2x256xf32>
    %230 = vector.broadcast %224 : vector<2x1xf32> to vector<2x256xf32>
    %231 = arith.addf %229, %230 : vector<2x256xf32>
    %232 = vector.extract_strided_slice %223 {offsets = [0, 1], sizes = [2, 1], strides = [1, 1]} : vector<2x8xf32> to vector<2x1xf32>
    %233 = vector.extract_strided_slice %68 {offsets = [1, 0], sizes = [1, 256], strides = [1, 1]} : vector<4x256xf32> to vector<1x256xf32>
    %234 = vector.broadcast %232 : vector<2x1xf32> to vector<2x256xf32>
    %235 = vector.broadcast %233 : vector<1x256xf32> to vector<2x256xf32>
    %236 = arith.mulf %234, %235 : vector<2x256xf32>
    %237 = arith.addf %231, %236 : vector<2x256xf32>
    %238 = vector.extract_strided_slice %223 {offsets = [0, 2], sizes = [2, 1], strides = [1, 1]} : vector<2x8xf32> to vector<2x1xf32>
    %239 = vector.extract_strided_slice %68 {offsets = [2, 0], sizes = [1, 256], strides = [1, 1]} : vector<4x256xf32> to vector<1x256xf32>
    %240 = vector.broadcast %238 : vector<2x1xf32> to vector<2x256xf32>
    %241 = vector.broadcast %239 : vector<1x256xf32> to vector<2x256xf32>
    %242 = arith.mulf %240, %241 : vector<2x256xf32>
    %243 = arith.addf %237, %242 : vector<2x256xf32>
    %244 = vector.extract_strided_slice %223 {offsets = [0, 3], sizes = [2, 1], strides = [1, 1]} : vector<2x8xf32> to vector<2x1xf32>
    %245 = vector.extract_strided_slice %68 {offsets = [3, 0], sizes = [1, 256], strides = [1, 1]} : vector<4x256xf32> to vector<1x256xf32>
    %246 = vector.broadcast %244 : vector<2x1xf32> to vector<2x256xf32>
    %247 = vector.broadcast %245 : vector<1x256xf32> to vector<2x256xf32>
    %248 = arith.mulf %246, %247 : vector<2x256xf32>
    %249 = arith.addf %243, %248 : vector<2x256xf32>
    %250 = vector.extract_strided_slice %223 {offsets = [0, 4], sizes = [2, 1], strides = [1, 1]} : vector<2x8xf32> to vector<2x1xf32>
    %251 = vector.extract_strided_slice %178 {offsets = [0, 0], sizes = [1, 256], strides = [1, 1]} : vector<4x256xf32> to vector<1x256xf32>
    %252 = vector.broadcast %250 : vector<2x1xf32> to vector<2x256xf32>
    %253 = vector.broadcast %251 : vector<1x256xf32> to vector<2x256xf32>
    %254 = arith.mulf %252, %253 : vector<2x256xf32>
    %255 = arith.addf %249, %254 : vector<2x256xf32>
    %256 = vector.extract_strided_slice %223 {offsets = [0, 5], sizes = [2, 1], strides = [1, 1]} : vector<2x8xf32> to vector<2x1xf32>
    %257 = vector.extract_strided_slice %178 {offsets = [1, 0], sizes = [1, 256], strides = [1, 1]} : vector<4x256xf32> to vector<1x256xf32>
    %258 = vector.broadcast %256 : vector<2x1xf32> to vector<2x256xf32>
    %259 = vector.broadcast %257 : vector<1x256xf32> to vector<2x256xf32>
    %260 = arith.mulf %258, %259 : vector<2x256xf32>
    %261 = arith.addf %255, %260 : vector<2x256xf32>
    %262 = vector.extract_strided_slice %223 {offsets = [0, 6], sizes = [2, 1], strides = [1, 1]} : vector<2x8xf32> to vector<2x1xf32>
    %263 = vector.extract_strided_slice %178 {offsets = [2, 0], sizes = [1, 256], strides = [1, 1]} : vector<4x256xf32> to vector<1x256xf32>
    %264 = vector.broadcast %262 : vector<2x1xf32> to vector<2x256xf32>
    %265 = vector.broadcast %263 : vector<1x256xf32> to vector<2x256xf32>
    %266 = arith.mulf %264, %265 : vector<2x256xf32>
    %267 = arith.addf %261, %266 : vector<2x256xf32>
    %268 = vector.extract_strided_slice %223 {offsets = [0, 7], sizes = [2, 1], strides = [1, 1]} : vector<2x8xf32> to vector<2x1xf32>
    %269 = vector.extract_strided_slice %178 {offsets = [3, 0], sizes = [1, 256], strides = [1, 1]} : vector<4x256xf32> to vector<1x256xf32>
    %270 = vector.broadcast %268 : vector<2x1xf32> to vector<2x256xf32>
    %271 = vector.broadcast %269 : vector<1x256xf32> to vector<2x256xf32>
    %272 = arith.mulf %270, %271 : vector<2x256xf32>
    %273 = arith.addf %267, %272 : vector<2x256xf32>
    %cst_36 = arith.constant dense<0.000000e+00> : vector<2xf32>
    %274 = vector.multi_reduction <add>, %273, %cst_36 [1] : vector<2x256xf32> to vector<2xf32>
    %275 = vector.shape_cast %274 : vector<2xf32> to vector<2x1xf32>
    %cst_37 = arith.constant 3.906250e-03 : f32
    %276 = vector.broadcast %cst_37 : f32 to vector<2x1xf32>
    %277 = arith.mulf %275, %276 : vector<2x1xf32>
    %c78 = arith.constant 78 : index
    %c0_38 = arith.constant 0 : index
    %278 = vector.load %arg2[%c78, %c0_38] : memref<96x256xf32, #tpu.memory_space<vmem>>, vector<2x4xf32>
    %c80 = arith.constant 80 : index
    %c0_39 = arith.constant 0 : index
    %279 = vector.load %arg2[%c80, %c0_39] : memref<96x256xf32, #tpu.memory_space<vmem>>, vector<1x4xf32>
    %280 = vector.broadcast %277 : vector<2x1xf32> to vector<2x4xf32>
    %281 = arith.mulf %278, %280 : vector<2x4xf32>
    %cst_40 = arith.constant dense<0.000000e+00> : vector<4xf32>
    %282 = vector.multi_reduction <add>, %281, %cst_40 [0] : vector<2x4xf32> to vector<4xf32>
    %283 = vector.shape_cast %282 : vector<4xf32> to vector<1x4xf32>
    %284 = arith.addf %279, %283 : vector<1x4xf32>
    %cst_41 = arith.constant 0.000000e+00 : f32
    %285 = vector.broadcast %cst_41 : f32 to vector<1x4xf32>
    %286 = arith.subf %285, %284 : vector<1x4xf32>
    %287 = math.exp %286 : vector<1x4xf32>
    %cst_42 = arith.constant 1.000000e+00 : f32
    %288 = vector.broadcast %cst_42 : f32 to vector<1x4xf32>
    %289 = arith.addf %288, %287 : vector<1x4xf32>
    %cst_43 = arith.constant 1.000000e+00 : f32
    %290 = vector.broadcast %cst_43 : f32 to vector<1x4xf32>
    %291 = arith.divf %290, %289 : vector<1x4xf32>
    %c81 = arith.constant 81 : index
    %c0_44 = arith.constant 0 : index
    %292 = vector.load %arg2[%c81, %c0_44] : memref<96x256xf32, #tpu.memory_space<vmem>>, vector<8x9xf32>
    %293 = vector.extract_strided_slice %291 {offsets = [0, 0], sizes = [1, 1], strides = [1, 1]} : vector<1x4xf32> to vector<1x1xf32>
    %294 = vector.extract_strided_slice %292 {offsets = [0, 0], sizes = [2, 9], strides = [1, 1]} : vector<8x9xf32> to vector<2x9xf32>
    %295 = vector.broadcast %293 : vector<1x1xf32> to vector<2x9xf32>
    %296 = arith.mulf %295, %294 : vector<2x9xf32>
    %297 = vector.extract_strided_slice %291 {offsets = [0, 1], sizes = [1, 1], strides = [1, 1]} : vector<1x4xf32> to vector<1x1xf32>
    %298 = vector.extract_strided_slice %292 {offsets = [2, 0], sizes = [2, 9], strides = [1, 1]} : vector<8x9xf32> to vector<2x9xf32>
    %299 = vector.broadcast %297 : vector<1x1xf32> to vector<2x9xf32>
    %300 = arith.mulf %299, %298 : vector<2x9xf32>
    %301 = arith.addf %296, %300 : vector<2x9xf32>
    %302 = vector.extract_strided_slice %291 {offsets = [0, 2], sizes = [1, 1], strides = [1, 1]} : vector<1x4xf32> to vector<1x1xf32>
    %303 = vector.extract_strided_slice %292 {offsets = [4, 0], sizes = [2, 9], strides = [1, 1]} : vector<8x9xf32> to vector<2x9xf32>
    %304 = vector.broadcast %302 : vector<1x1xf32> to vector<2x9xf32>
    %305 = arith.mulf %304, %303 : vector<2x9xf32>
    %306 = arith.addf %301, %305 : vector<2x9xf32>
    %307 = vector.extract_strided_slice %291 {offsets = [0, 3], sizes = [1, 1], strides = [1, 1]} : vector<1x4xf32> to vector<1x1xf32>
    %308 = vector.extract_strided_slice %292 {offsets = [6, 0], sizes = [2, 9], strides = [1, 1]} : vector<8x9xf32> to vector<2x9xf32>
    %309 = vector.broadcast %307 : vector<1x1xf32> to vector<2x9xf32>
    %310 = arith.mulf %309, %308 : vector<2x9xf32>
    %311 = arith.addf %306, %310 : vector<2x9xf32>
    %c89 = arith.constant 89 : index
    %c0_45 = arith.constant 0 : index
    %312 = vector.load %arg2[%c89, %c0_45] : memref<96x256xf32, #tpu.memory_space<vmem>>, vector<2x1xf32>
    %313 = vector.extract_strided_slice %311 {offsets = [0, 4], sizes = [2, 1], strides = [1, 1]} : vector<2x9xf32> to vector<2x1xf32>
    %314 = vector.broadcast %313 : vector<2x1xf32> to vector<2x256xf32>
    %315 = arith.mulf %273, %314 : vector<2x256xf32>
    %316 = vector.broadcast %312 : vector<2x1xf32> to vector<2x256xf32>
    %317 = arith.addf %315, %316 : vector<2x256xf32>
    %c17_i32_46 = arith.constant 17 : i32
    %318 = tpu.dynamic_rotate %273 by %c17_i32_46 dim 1 : vector<2x256xf32>, i32 -> vector<2x256xf32>
    %319 = vector.extract_strided_slice %311 {offsets = [0, 0], sizes = [2, 1], strides = [1, 1]} : vector<2x9xf32> to vector<2x1xf32>
    %320 = vector.broadcast %319 : vector<2x1xf32> to vector<2x256xf32>
    %321 = arith.mulf %318, %320 : vector<2x256xf32>
    %322 = vector.extract_strided_slice %0 {offsets = [0, 0], sizes = [1, 256], strides = [1, 1]} : vector<9x256xf32> to vector<1x256xf32>
    %323 = vector.broadcast %322 : vector<1x256xf32> to vector<2x256xf32>
    %324 = arith.mulf %321, %323 : vector<2x256xf32>
    %325 = arith.addf %317, %324 : vector<2x256xf32>
    %c16_i32_47 = arith.constant 16 : i32
    %326 = tpu.dynamic_rotate %273 by %c16_i32_47 dim 1 : vector<2x256xf32>, i32 -> vector<2x256xf32>
    %327 = vector.extract_strided_slice %311 {offsets = [0, 1], sizes = [2, 1], strides = [1, 1]} : vector<2x9xf32> to vector<2x1xf32>
    %328 = vector.broadcast %327 : vector<2x1xf32> to vector<2x256xf32>
    %329 = arith.mulf %326, %328 : vector<2x256xf32>
    %330 = vector.extract_strided_slice %0 {offsets = [1, 0], sizes = [1, 256], strides = [1, 1]} : vector<9x256xf32> to vector<1x256xf32>
    %331 = vector.broadcast %330 : vector<1x256xf32> to vector<2x256xf32>
    %332 = arith.mulf %329, %331 : vector<2x256xf32>
    %333 = arith.addf %325, %332 : vector<2x256xf32>
    %c15_i32_48 = arith.constant 15 : i32
    %334 = tpu.dynamic_rotate %273 by %c15_i32_48 dim 1 : vector<2x256xf32>, i32 -> vector<2x256xf32>
    %335 = vector.extract_strided_slice %311 {offsets = [0, 2], sizes = [2, 1], strides = [1, 1]} : vector<2x9xf32> to vector<2x1xf32>
    %336 = vector.broadcast %335 : vector<2x1xf32> to vector<2x256xf32>
    %337 = arith.mulf %334, %336 : vector<2x256xf32>
    %338 = vector.extract_strided_slice %0 {offsets = [2, 0], sizes = [1, 256], strides = [1, 1]} : vector<9x256xf32> to vector<1x256xf32>
    %339 = vector.broadcast %338 : vector<1x256xf32> to vector<2x256xf32>
    %340 = arith.mulf %337, %339 : vector<2x256xf32>
    %341 = arith.addf %333, %340 : vector<2x256xf32>
    %c1_i32_49 = arith.constant 1 : i32
    %342 = tpu.dynamic_rotate %273 by %c1_i32_49 dim 1 : vector<2x256xf32>, i32 -> vector<2x256xf32>
    %343 = vector.extract_strided_slice %311 {offsets = [0, 3], sizes = [2, 1], strides = [1, 1]} : vector<2x9xf32> to vector<2x1xf32>
    %344 = vector.broadcast %343 : vector<2x1xf32> to vector<2x256xf32>
    %345 = arith.mulf %342, %344 : vector<2x256xf32>
    %346 = vector.extract_strided_slice %0 {offsets = [3, 0], sizes = [1, 256], strides = [1, 1]} : vector<9x256xf32> to vector<1x256xf32>
    %347 = vector.broadcast %346 : vector<1x256xf32> to vector<2x256xf32>
    %348 = arith.mulf %345, %347 : vector<2x256xf32>
    %349 = arith.addf %341, %348 : vector<2x256xf32>
    %c255_i32_50 = arith.constant 255 : i32
    %350 = tpu.dynamic_rotate %273 by %c255_i32_50 dim 1 : vector<2x256xf32>, i32 -> vector<2x256xf32>
    %351 = vector.extract_strided_slice %311 {offsets = [0, 5], sizes = [2, 1], strides = [1, 1]} : vector<2x9xf32> to vector<2x1xf32>
    %352 = vector.broadcast %351 : vector<2x1xf32> to vector<2x256xf32>
    %353 = arith.mulf %350, %352 : vector<2x256xf32>
    %354 = vector.extract_strided_slice %0 {offsets = [5, 0], sizes = [1, 256], strides = [1, 1]} : vector<9x256xf32> to vector<1x256xf32>
    %355 = vector.broadcast %354 : vector<1x256xf32> to vector<2x256xf32>
    %356 = arith.mulf %353, %355 : vector<2x256xf32>
    %357 = arith.addf %349, %356 : vector<2x256xf32>
    %c241_i32_51 = arith.constant 241 : i32
    %358 = tpu.dynamic_rotate %273 by %c241_i32_51 dim 1 : vector<2x256xf32>, i32 -> vector<2x256xf32>
    %359 = vector.extract_strided_slice %311 {offsets = [0, 6], sizes = [2, 1], strides = [1, 1]} : vector<2x9xf32> to vector<2x1xf32>
    %360 = vector.broadcast %359 : vector<2x1xf32> to vector<2x256xf32>
    %361 = arith.mulf %358, %360 : vector<2x256xf32>
    %362 = vector.extract_strided_slice %0 {offsets = [6, 0], sizes = [1, 256], strides = [1, 1]} : vector<9x256xf32> to vector<1x256xf32>
    %363 = vector.broadcast %362 : vector<1x256xf32> to vector<2x256xf32>
    %364 = arith.mulf %361, %363 : vector<2x256xf32>
    %365 = arith.addf %357, %364 : vector<2x256xf32>
    %c240_i32_52 = arith.constant 240 : i32
    %366 = tpu.dynamic_rotate %273 by %c240_i32_52 dim 1 : vector<2x256xf32>, i32 -> vector<2x256xf32>
    %367 = vector.extract_strided_slice %311 {offsets = [0, 7], sizes = [2, 1], strides = [1, 1]} : vector<2x9xf32> to vector<2x1xf32>
    %368 = vector.broadcast %367 : vector<2x1xf32> to vector<2x256xf32>
    %369 = arith.mulf %366, %368 : vector<2x256xf32>
    %370 = vector.extract_strided_slice %0 {offsets = [7, 0], sizes = [1, 256], strides = [1, 1]} : vector<9x256xf32> to vector<1x256xf32>
    %371 = vector.broadcast %370 : vector<1x256xf32> to vector<2x256xf32>
    %372 = arith.mulf %369, %371 : vector<2x256xf32>
    %373 = arith.addf %365, %372 : vector<2x256xf32>
    %c239_i32_53 = arith.constant 239 : i32
    %374 = tpu.dynamic_rotate %273 by %c239_i32_53 dim 1 : vector<2x256xf32>, i32 -> vector<2x256xf32>
    %375 = vector.extract_strided_slice %311 {offsets = [0, 8], sizes = [2, 1], strides = [1, 1]} : vector<2x9xf32> to vector<2x1xf32>
    %376 = vector.broadcast %375 : vector<2x1xf32> to vector<2x256xf32>
    %377 = arith.mulf %374, %376 : vector<2x256xf32>
    %378 = vector.extract_strided_slice %0 {offsets = [8, 0], sizes = [1, 256], strides = [1, 1]} : vector<9x256xf32> to vector<1x256xf32>
    %379 = vector.broadcast %378 : vector<1x256xf32> to vector<2x256xf32>
    %380 = arith.mulf %377, %379 : vector<2x256xf32>
    %381 = arith.addf %373, %380 : vector<2x256xf32>
    %382 = tpu.concatenate %273, %381 in 0 : vector<2x256xf32>, vector<2x256xf32> -> vector<4x256xf32>
    %383 = arith.addf %2, %382 : vector<4x256xf32>
    %c0_54 = arith.constant 0 : index
    %c0_55 = arith.constant 0 : index
    %c0_56 = arith.constant 0 : index
    %384 = vector.load %arg3[%c0_54, %c0_55, %c0_56] : memref<1x4x256xf32, #tpu.memory_space<vmem>>, vector<1x4x256xf32>
    %385 = vector.shape_cast %384 : vector<1x4x256xf32> to vector<4x256xf32>
    %386 = vector.shape_cast %383 : vector<4x256xf32> to vector<1x4x256xf32>
    tpu.vector_store %arg3[%c0_54, %c0_55, %c0_56], %386 {strides = array<i32>} : memref<1x4x256xf32, #tpu.memory_space<vmem>>, vector<1x4x256xf32>,
    return
  }
  func.func @transform_0(%arg0: i32) -> (i32, i32, i32) {
    %c0_i32 = arith.constant 0 : i32
    %c0_i32_0 = arith.constant 0 : i32
    %c0_i32_1 = arith.constant 0 : i32
    return %arg0, %c0_i32, %c0_i32_0 : i32, i32, i32
  }
  func.func @transform_1(%arg0: i32) -> (i32, i32) {
    %c0_i32 = arith.constant 0 : i32
    %c0_i32_0 = arith.constant 0 : i32
    %c0_i32_1 = arith.constant 0 : i32
    return %c0_i32, %c0_i32_0 : i32, i32
  }
  func.func @transform_2(%arg0: i32) -> (i32, i32, i32) {
    %c0_i32 = arith.constant 0 : i32
    %c0_i32_0 = arith.constant 0 : i32
    %c0_i32_1 = arith.constant 0 : i32
    return %arg0, %c0_i32, %c0_i32_0 : i32, i32, i32
  }
}

</mosaic_0001>

<llo_original>
// kernel: fwd.1
$region0: #{fwd.1}
  #allocation0 [shape = 'u32[]', space=smem, size = 0x4, offset = 0x4, fixed_abs, tag = 'smem constant byte address 0x4 - core index']
  #allocation1 [shape = 'u32[144,128]{1,0:T(1,128)}', space=vmem, size = 0x12000, scoped, tag = 'internal scratch']
  %s0 = inlined_call_operand.vmem [shape: f32[2,4,256], index: 0, kind: input, shape index: {}]
  %s1 = inlined_call_operand.hbm [shape: f32[96,256], index: 1, kind: input, shape index: {}]
  %s2 = inlined_call_operand.vmem [shape: f32[2,4,256], index: 2, kind: output, shape index: {}]
  %s3 = sld [smem:[#allocation0]]
  $region45: #{fwd.1} parent=0
    _
  %s5 = ssub.s32 1, %s3
  %s6 = scalar_select 0, %s5, %s3
  $region1: #{fwd.1} parent=0
    #allocation2 [shape = 'u8[98304]{0}', space=vmem, size = 0x18000, scoped, tag = 'input window, operand 1, single buffered']
    #allocation3 [shape = 's32[2]{0}', space=sflag, size = 0x8, scoped, tag = 'scoped memory for fwd.1']
    %7 = vsyncpa [#allocation3], 0
    loop: start=0, step=1, limit=4
    $region2: #{fwd.1} parent=1 // loop_pre_header
      _
    $region3: #{fwd.1} parent=1 // loop_header
      %s9 = sphi 0, %s13
      %p10 = scmp.ge.s32.totalorder %s9, 4
      %s19 = sphi 0, %s21
      %s22 = sphi 0, %s19
      %s23 = sphi 0, %s22
      %s39 = sphi 0, %s23
      %s43 = sphi 0, %s43
      %s45 = sphi 0, %s43
      %s46 = sphi 0, %s45
      %s60 = sphi 0, %s46
      %s66 = sphi 0, %s68
      %s69 = sphi 0, %s66
      %s70 = sphi 0, %s69
      %s86 = sphi 0, %s70
    $region4: #{fwd.1} parent=1 // loop_header_branch
      %12 = sbr.rel (%p10) target = $region8
    $region5: #{fwd.1} parent=1 // loop_body
      %s14 = ssub.s32 %s9, 1
      %s15 = ssub.s32 %s9, 2
      %s16 = sadd.s32 %s9, 1
      %s17 = ssub.s32 %s9, %s16
      %p18 = scmp.eq.s32.totalorder %s17, 0
      %s20 = sadd.s32 %s19, 1
      %s21 = scalar_select %p18, %s19, %s20
      %p24 = pneg %p18
      %p25 = scmp.eq.s32.totalorder %s9, 1
      %p26 = por %p24, %p25
      %p27 = scmp.ne.s32.totalorder %s19, %s22
      %p28 = scmp.eq.s32.totalorder %s9, 0
      %p29 = por %p27, %p28
      %p30 = scmp.ne.s32.totalorder %s19, %s22
      %p31 = scmp.eq.s32.totalorder %s14, 1
      %p32 = por %p30, %p31
      %p33 = scmp.ne.s32.totalorder %s22, %s23
      %p34 = scmp.eq.s32.totalorder %s14, 0
      %p35 = por %p33, %p34
      %p36 = scmp.ne.s32.totalorder %s22, %s23
      %p37 = scmp.eq.s32.totalorder %s15, 1
      %p38 = por %p36, %p37
      %p40 = scmp.ne.s32.totalorder %s23, %s39
      %p41 = scmp.eq.s32.totalorder %s15, 0
      %p42 = por %p40, %p41
      %s44 = sadd.s32 %s43, 1
      %p47 = scmp.eq.s32.totalorder %s9, 1
      %p48 = scmp.ne.s32.totalorder %s43, %s45
      %p49 = scmp.eq.s32.totalorder %s9, 0
      %p50 = por %p48, %p49
      %p51 = scmp.ne.s32.totalorder %s43, %s45
      %p52 = scmp.eq.s32.totalorder %s14, 1
      %p53 = por %p51, %p52
      %p54 = scmp.ne.s32.totalorder %s45, %s46
      %p55 = scmp.eq.s32.totalorder %s14, 0
      %p56 = por %p54, %p55
      %p57 = scmp.ne.s32.totalorder %s45, %s46
      %p58 = scmp.eq.s32.totalorder %s15, 1
      %p59 = por %p57, %p58
      %p61 = scmp.ne.s32.totalorder %s46, %s60
      %p62 = scmp.eq.s32.totalorder %s15, 0
      %p63 = por %p61, %p62
      %s64 = ssub.s32 %s9, %s16
      %p65 = scmp.eq.s32.totalorder %s64, 0
      %s67 = sadd.s32 %s66, 1
      %s68 = scalar_select %p65, %s66, %s67
      %p71 = pneg %p65
      %p72 = scmp.eq.s32.totalorder %s9, 1
      %p73 = por %p71, %p72
      %p74 = scmp.ne.s32.totalorder %s66, %s69
      %p75 = scmp.eq.s32.totalorder %s9, 0
      %p76 = por %p74, %p75
      %p77 = scmp.ne.s32.totalorder %s66, %s69
      %p78 = scmp.eq.s32.totalorder %s14, 1
      %p79 = por %p77, %p78
      %p80 = scmp.ne.s32.totalorder %s69, %s70
      %p81 = scmp.eq.s32.totalorder %s14, 0
      %p82 = por %p80, %p81
      %p83 = scmp.ne.s32.totalorder %s69, %s70
      %p84 = scmp.eq.s32.totalorder %s15, 1
      %p85 = por %p83, %p84
      %p87 = scmp.ne.s32.totalorder %s70, %s86
      %p88 = scmp.eq.s32.totalorder %s15, 0
      %p89 = por %p87, %p88
      %p90 = scmp.le.s32.totalorder 1, %s9
      %p91 = scmp.lt.s32.totalorder %s9, 3
      %p92 = pnand %p90, %p91
      %p93 = pneg %p92
      // Predicated region
      $region9: #{fwd.1} parent=5 // pred_check
        _
      $region10: #{fwd.1} parent=5 // pred_check_branch
        %95 = sbr.rel (%p92) target = $region12
      $region11: #{fwd.1} parent=5 // pred_region
        %s96 = ssub.s32 %s9, 1
        // Predicated region
        $region13: #{fwd.1} parent=11 // pred_check
          %p97 = pneg %p56
        $region14: #{fwd.1} parent=11 // pred_check_branch
          %99 = sbr.rel (%p97) target = $region16
        $region15: #{fwd.1} parent=11 // pred_region
          %s101 = ssub.s32 3072, 3072
          %102 = vsyncadd [#allocation3], %s101
          %s103 = sshll.u32 [#allocation2], 4
          %s104 = int_to_ptr.vmem [resolvable:$true] %s103
          %109 = dma.hbm_to_vmem [thread:$0]  %s1, 3072, %s104, [#allocation3], 256, 256, 16
        $region16: #{fwd.1} parent=11 // pred_fallthru
          _
      $region12: #{fwd.1} parent=5 // pred_fallthru
        _
      %p110 = scmp.lt.s32.totalorder %s9, 2
      // Predicated region
      $region17: #{fwd.1} parent=5 // pred_check
        %p111 = pneg %p110
      $region18: #{fwd.1} parent=5 // pred_check_branch
        %113 = sbr.rel (%p111) target = $region20
      $region19: #{fwd.1} parent=5 // pred_region
        // Predicated region
        $region21: #{fwd.1} parent=19 // pred_check
          %p114 = pneg %p29
        $region22: #{fwd.1} parent=19 // pred_check_branch
          %116 = sbr.rel (%p114) target = $region24
        $region23: #{fwd.1} parent=19 // pred_region
          %p117 = scmp.lt.s32.totalorder %s9, 1
          %s118 = scalar_select %p117, %s9, 1
          %s119 = smul.addr %s118, 2
          %s120 = smul.addr %s119, 4
          %s121 = scalar_lea.vmem %s0, %s120
        $region24: #{fwd.1} parent=19 // pred_fallthru
          _
      $region20: #{fwd.1} parent=5 // pred_fallthru
        _
      %p122 = scmp.le.s32.totalorder 1, %s9
      %p123 = scmp.lt.s32.totalorder %s9, 3
      %p124 = pnand %p122, %p123
      %p125 = pneg %p124
      // Predicated region
      $region25: #{fwd.1} parent=5 // pred_check
        _
      $region26: #{fwd.1} parent=5 // pred_check_branch
        %127 = sbr.rel (%p124) target = $region28
      $region27: #{fwd.1} parent=5 // pred_region
        %s128 = ssub.s32 %s9, 1
        // Predicated region
        $region29: #{fwd.1} parent=27 // pred_check
          %p129 = pneg %p56
        $region30: #{fwd.1} parent=27 // pred_check_branch
          %131 = sbr.rel (%p129) target = $region32
        $region31: #{fwd.1} parent=27 // pred_region
          %132 = dma.done [#allocation3], 3072
        $region32: #{fwd.1} parent=27 // pred_fallthru
          _
        %p133 = scmp.lt.s32.totalorder %s14, 1
        %s134 = scalar_select %p133, %s14, 1
        %s135 = smul.addr %s134, 2
        %s136 = smul.addr %s135, 4
        %s137 = scalar_lea.vmem %s0, %s136
        %p138 = pneg %p35
        %p139 = pneg %p32
        %p140 = pneg %p56
        %p141 = pneg %p53
        %p142 = pneg %p82
        %p143 = pneg %p79
        %p144 = scmp.lt.s32.totalorder %s14, 1
        %s145 = scalar_select %p144, %s14, 1
        %s146 = smul.addr %s145, 2
        %s147 = smul.addr %s146, 4
        %s148 = scalar_lea.vmem %s2, %s147
        %p149 = scmp.lt.s32.totalorder %s14, 1
        %s150 = scalar_select %p149, %s14, 1
        %s151 = smul.addr %s150, 2
        %s152 = smul.addr %s151, 4
        %s153 = scalar_lea.vmem %s0, %s152
        %p154 = scmp.lt.s32.totalorder %s14, 1
        %s155 = scalar_select %p154, %s14, 1
        %s156 = smul.addr %s155, 2
        %s157 = smul.addr %s156, 4
        %s158 = scalar_lea.vmem %s2, %s157
        %v159 = vld [vmem:[#allocation2] sm:$0xff]
        %v160 = vld [vmem:[#allocation2 + $0x8] sm:$0xff]
        %v161 = vld [vmem:[#allocation2 + $0x10] sm:$0x1]
        %v162 = vld [vmem:[#allocation2 + $0x18] sm:$0x1]
        %v163 = vld [vmem:[%s153] sm:$0xff]
        %v165 = vcombine.high %v163, %v163
        %vm167 = vcmask 1043456
        %v168 = vsel %vm167, %v163, 0.0
        %v169 = vsel %vm167, %v165, 0.0
        %v170 = vadd.f32 %v168, %v169
        %171 = vadd.xlane.f32.xlu0 %v170
        %v172 = vpop.xlane.xlu0 %171
        %v173 = vmul.f32 %v172, 0.00390625
        %v174 = vld [vmem:[#allocation2 + $0x10] sm:$0x1e]
        %v175 = vld [vmem:[#allocation2 + $0x15] ss:$0 sm:$0xff]
        %v177 = vrot.slane %v173, 7
        %v179 = vmul.f32 %v174, %v177
        %v181 = vrot.slane %v179, 1
        %vm183 = vcmask 27648
        %v184 = vsel %vm183, %v181, 0.0
        %v185 = vrot.slane %v184, 4
        %v186 = vadd.f32 %v184, %v185
        %v187 = vrot.slane %v186, 2
        %v188 = vadd.f32 %v186, %v187
        %v189 = vrot.slane %v188, 1
        %v190 = vadd.f32 %v188, %v189
        %v191 = vadd.f32 %v175, %v190
        %v192 = vsub.f32 0.0, %v191
        %v193 = vmul.f32 %v192, 1.442695
        %v194 = vpow.pop %v193
        %v195 = vadd.f32 %v194, 1.0
        %v196 = vrcp.pop %v195
        %v197 = vmul.f32 1.0, %v196
        %v198 = vld [vmem:[#allocation2 + $0x10] sm:$0xc0]
        %v199 = vld [vmem:[#allocation2 + $0x20] sm:$0xff]
        %v200 = vld [vmem:[#allocation2 + $0x30] sm:$0x3f]
        %202 = vset.pattern.permute.xlu0 0
        %203 = vperm.xlu0 %202, %v197
        %v204 = vpop.permute.xlu0 %203
        %v206 = vmul.f32 %v204, %v198
        %v207 = vmul.f32 %v204, %v199
        %208 = vset.pattern.permute.xlu0 1
        %209 = vperm.xlu0 %208, %v197
        %v210 = vpop.permute.xlu0 %209
        %v212 = vmul.f32 %v210, %v199
        %v214 = vrot.slane %v212, 4
        %v216 = vadd.f32 %v206, %v214
        %v217 = vadd.f32 %v207, %v214
        %218 = vset.pattern.permute.xlu0 2
        %219 = vperm.xlu0 %218, %v197
        %v220 = vpop.permute.xlu0 %219
        %v222 = vmul.f32 %v220, %v199
        %v223 = vmul.f32 %v220, %v200
        %v224 = vadd.f32 %v216, %v222
        %v225 = vadd.f32 %v217, %v223
        %226 = vset.pattern.permute.xlu0 3
        %227 = vperm.xlu0 %226, %v197
        %v228 = vpop.permute.xlu0 %227
        %v230 = vmul.f32 %v228, %v200
        %v232 = vrot.slane %v230, 4
        %v234 = vadd.f32 %v224, %v232
        %v235 = vadd.f32 %v225, %v232
        %v236 = vld [vmem:[#allocation2 + $0x30] sm:$0xc0]
        %v237 = vld [vmem:[#allocation2 + $0x40] sm:$0x3]
        %239 = vset.pattern.permute.xlu0 0
        %240 = vperm.xlu0 %239, %v234
        %v241 = vpop.permute.xlu0 %240
        %244 = vset.pattern.permute.xlu0 0
        %245 = vperm.xlu0 %244, %v235
        %v246 = vpop.permute.xlu0 %245
        %v248 = vlaneseq
        %v249 = vshrl.u32 %v248, 7
        %v250 = vsub.s32 0, %v249
        %v251 = vrot.slane %v163, %v250
        %v252 = vlaneseq
        %v253 = vshrl.u32 %v252, 7
        %v254 = vsub.s32 4, %v253
        %v255 = vrot.slane %v163, %v254
        %v258 = vlaneseq
        %v259 = vshrl.u32 %v258, 7
        %v260 = vsub.s32 0, %v259
        %v261 = vrot.slane %v251, %v260
        %v262 = vlaneseq
        %v263 = vshrl.u32 %v262, 7
        %v264 = vsub.s32 0, %v263
        %v265 = vrot.slane %v255, %v264
        %v266 = vmul.f32 %v241, %v261
        %v267 = vmul.f32 %v241, %v265
        %v268 = vmul.f32 %v246, %v261
        %v269 = vmul.f32 %v246, %v265
        %271 = vset.pattern.permute.xlu0 0
        %272 = vperm.xlu0 %271, %v236
        %v273 = vpop.permute.xlu0 %272
        %276 = vset.pattern.permute.xlu0 0
        %277 = vperm.xlu0 %276, %v237
        %v278 = vpop.permute.xlu0 %277
        %v280 = vadd.f32 %v266, %v273
        %v281 = vadd.f32 %v267, %v273
        %v282 = vadd.f32 %v268, %v278
        %v283 = vadd.f32 %v269, %v278
        %284 = vset.pattern.permute.xlu0 1
        %285 = vperm.xlu0 %284, %v234
        %v286 = vpop.permute.xlu0 %285
        %288 = vset.pattern.permute.xlu0 1
        %289 = vperm.xlu0 %288, %v235
        %v290 = vpop.permute.xlu0 %289
        %v292 = vlaneseq
        %v293 = vshrl.u32 %v292, 7
        %v294 = vsub.s32 1, %v293
        %v295 = vrot.slane %v163, %v294
        %v296 = vlaneseq
        %v297 = vshrl.u32 %v296, 7
        %v298 = vsub.s32 5, %v297
        %v299 = vrot.slane %v163, %v298
        %v302 = vlaneseq
        %v303 = vshrl.u32 %v302, 7
        %v304 = vsub.s32 1, %v303
        %v305 = vrot.slane %v295, %v304
        %v306 = vlaneseq
        %v307 = vshrl.u32 %v306, 7
        %v308 = vsub.s32 1, %v307
        %v309 = vrot.slane %v299, %v308
        %v310 = vmul.f32 %v286, %v305
        %v311 = vmul.f32 %v286, %v309
        %v312 = vmul.f32 %v290, %v305
        %v313 = vmul.f32 %v290, %v309
        %v314 = vadd.f32 %v280, %v310
        %v315 = vadd.f32 %v281, %v311
        %v316 = vadd.f32 %v282, %v312
        %v317 = vadd.f32 %v283, %v313
        %318 = vset.pattern.permute.xlu0 2
        %319 = vperm.xlu0 %318, %v234
        %v320 = vpop.permute.xlu0 %319
        %322 = vset.pattern.permute.xlu0 2
        %323 = vperm.xlu0 %322, %v235
        %v324 = vpop.permute.xlu0 %323
        %v326 = vlaneseq
        %v327 = vshrl.u32 %v326, 7
        %v328 = vsub.s32 2, %v327
        %v329 = vrot.slane %v163, %v328
        %v330 = vlaneseq
        %v331 = vshrl.u32 %v330, 7
        %v332 = vsub.s32 6, %v331
        %v333 = vrot.slane %v163, %v332
        %v336 = vlaneseq
        %v337 = vshrl.u32 %v336, 7
        %v338 = vsub.s32 2, %v337
        %v339 = vrot.slane %v329, %v338
        %v340 = vlaneseq
        %v341 = vshrl.u32 %v340, 7
        %v342 = vsub.s32 2, %v341
        %v343 = vrot.slane %v333, %v342
        %v344 = vmul.f32 %v320, %v339
        %v345 = vmul.f32 %v320, %v343
        %v346 = vmul.f32 %v324, %v339
        %v347 = vmul.f32 %v324, %v343
        %v348 = vadd.f32 %v314, %v344
        %v349 = vadd.f32 %v315, %v345
        %v350 = vadd.f32 %v316, %v346
        %v351 = vadd.f32 %v317, %v347
        %352 = vset.pattern.permute.xlu0 3
        %353 = vperm.xlu0 %352, %v234
        %v354 = vpop.permute.xlu0 %353
        %356 = vset.pattern.permute.xlu0 3
        %357 = vperm.xlu0 %356, %v235
        %v358 = vpop.permute.xlu0 %357
        %v360 = vlaneseq
        %v361 = vshrl.u32 %v360, 7
        %v362 = vsub.s32 3, %v361
        %v363 = vrot.slane %v163, %v362
        %v364 = vlaneseq
        %v365 = vshrl.u32 %v364, 7
        %v366 = vsub.s32 7, %v365
        %v367 = vrot.slane %v163, %v366
        %v370 = vlaneseq
        %v371 = vshrl.u32 %v370, 7
        %v372 = vsub.s32 3, %v371
        %v373 = vrot.slane %v363, %v372
        %v374 = vlaneseq
        %v375 = vshrl.u32 %v374, 7
        %v376 = vsub.s32 3, %v375
        %v377 = vrot.slane %v367, %v376
        %v378 = vmul.f32 %v354, %v373
        %v379 = vmul.f32 %v354, %v377
        %v380 = vmul.f32 %v358, %v373
        %v381 = vmul.f32 %v358, %v377
        %v382 = vadd.f32 %v348, %v378
        %v383 = vadd.f32 %v349, %v379
        %v384 = vadd.f32 %v350, %v380
        %v385 = vadd.f32 %v351, %v381
        %v386 = vmax.f32 %v382, 0.0
        %v387 = vmax.f32 %v383, 0.0
        %v388 = vmax.f32 %v384, 0.0
        %v389 = vmax.f32 %v385, 0.0
        %vm390 = vcmask 1047558
        %v391 = vsel %vm390, %v386, 0.0
        %v392 = vsel %vm390, %v387, 0.0
        %v393 = vadd.f32 %v391, %v392
        %394 = vadd.xlane.f32.xlu0 %v393
        %v395 = vpop.xlane.xlu0 %394
        %vm396 = vcmask 1041408
        %v397 = vsel %vm396, %v388, 0.0
        %v398 = vsel %vm396, %v389, 0.0
        %v399 = vadd.f32 %v397, %v398
        %400 = vadd.xlane.f32.xlu0 %v399
        %v401 = vpop.xlane.xlu0 %400
        %v402 = vmul.f32 %v395, 0.00390625
        %v403 = vmul.f32 %v401, 0.00390625
        %v404 = vld [vmem:[#allocation2 + $0x40] sm:$0x3c]
        %v405 = vld [vmem:[#allocation2 + $0x46] ss:$0 sm:$0xff]
        %v408 = vrot.slane %v402, 4
        %v409 = vrot.slane %v403, 4
        %v410 = vsel %vm167, %v408, %v409
        %v412 = vmul.f32 %v404, %v410
        %v414 = vrot.slane %v412, 2
        %v416 = vsel %vm183, %v414, 0.0
        %v417 = vrot.slane %v416, 4
        %v418 = vadd.f32 %v416, %v417
        %v419 = vrot.slane %v418, 2
        %v420 = vadd.f32 %v418, %v419
        %v421 = vrot.slane %v420, 1
        %v422 = vadd.f32 %v420, %v421
        %v423 = vadd.f32 %v405, %v422
        %v424 = vsub.f32 0.0, %v423
        %v425 = vmul.f32 %v424, 1.442695
        %v426 = vpow.pop %v425
        %v427 = vadd.f32 %v426, 1.0
        %v428 = vrcp.pop %v427
        %v429 = vmul.f32 1.0, %v428
        %v430 = vld [vmem:[#allocation2 + $0x40] sm:$0x80]
        %v431 = vld [vmem:[#allocation2 + $0x50] sm:$0xff]
        %v432 = vld [vmem:[#allocation2 + $0x60] sm:$0x7f]
        %434 = vset.pattern.permute.xlu0 0
        %435 = vperm.xlu0 %434, %v429
        %v436 = vpop.permute.xlu0 %435
        %v438 = vmul.f32 %v436, %v430
        %v439 = vmul.f32 %v436, %v431
        %440 = vset.pattern.permute.xlu0 1
        %441 = vperm.xlu0 %440, %v429
        %v442 = vpop.permute.xlu0 %441
        %v444 = vmul.f32 %v442, %v431
        %v446 = vrot.slane %v444, 4
        %v448 = vadd.f32 %v438, %v446
        %v449 = vadd.f32 %v439, %v446
        %450 = vset.pattern.permute.xlu0 2
        %451 = vperm.xlu0 %450, %v429
        %v452 = vpop.permute.xlu0 %451
        %v454 = vmul.f32 %v452, %v431
        %v455 = vmul.f32 %v452, %v432
        %v456 = vadd.f32 %v448, %v454
        %v457 = vadd.f32 %v449, %v455
        %458 = vset.pattern.permute.xlu0 3
        %459 = vperm.xlu0 %458, %v429
        %v460 = vpop.permute.xlu0 %459
        %v462 = vmul.f32 %v460, %v432
        %v464 = vrot.slane %v462, 4
        %v466 = vadd.f32 %v456, %v464
        %v467 = vadd.f32 %v457, %v464
        %v468 = vld [vmem:[#allocation2 + $0x60] sm:$0x80]
        %v469 = vld [vmem:[#allocation2 + $0x70] sm:$0x7]
        %471 = vset.pattern.permute.xlu0 4
        %472 = vperm.xlu0 %471, %v466
        %v473 = vpop.permute.xlu0 %472
        %475 = vset.pattern.permute.xlu0 4
        %476 = vperm.xlu0 %475, %v467
        %v477 = vpop.permute.xlu0 %476
        %vm478 = vcmask 1046528
        %v479 = vrot.slane %v473, 1
        %v480 = vrot.slane %v477, 1
        %v481 = vsel %vm478, %v479, %v480
        %v484 = vmul.f32 %v386, %v481
        %v485 = vmul.f32 %v387, %v481
        %v486 = vmul.f32 %v388, %v480
        %v487 = vmul.f32 %v389, %v480
        %489 = vset.pattern.permute.xlu0 0
        %490 = vperm.xlu0 %489, %v468
        %v491 = vpop.permute.xlu0 %490
        %493 = vset.pattern.permute.xlu0 0
        %494 = vperm.xlu0 %493, %v469
        %v495 = vpop.permute.xlu0 %494
        %v496 = vrot.slane %v491, 1
        %v497 = vrot.slane %v495, 1
        %v498 = vsel %vm478, %v496, %v497
        %v501 = vadd.f32 %v484, %v498
        %v502 = vadd.f32 %v485, %v498
        %v503 = vadd.f32 %v486, %v497
        %v504 = vadd.f32 %v487, %v497
        %v509 = vrot.slane %v386, 6
        %v510 = vrot.slane %v388, 6
        %v511 = vsel %vm396, %v509, %v510
        %v512 = vrot.slane %v387, 6
        %v513 = vrot.slane %v389, 6
        %v514 = vsel %vm396, %v512, %v513
        %517 = vrot.lane.b32.xlu0 %v511, 17
        %v518 = vpop.permute.xlu0 %517
        %519 = vrot.lane.b32.xlu0 %v514, 17
        %v520 = vpop.permute.xlu0 %519
        %v521 = vlaneseq
        %v522 = vand.u32 %v521, 127
        %vm523 = vcmp.lt.s32.totalorder %v522, 17
        %v524 = vsel %vm523, %v518, %v520
        %v525 = vsel %vm523, %v520, %v518
        %526 = vset.pattern.permute.xlu0 0
        %527 = vperm.xlu0 %526, %v466
        %v528 = vpop.permute.xlu0 %527
        %529 = vset.pattern.permute.xlu0 0
        %530 = vperm.xlu0 %529, %v467
        %v531 = vpop.permute.xlu0 %530
        %vm532 = vcmask 1040384
        %v533 = vrot.slane %v528, 7
        %v534 = vrot.slane %v531, 7
        %v535 = vsel %vm532, %v533, %v534
        %v537 = vmul.f32 %v525, %v535
        %v538 = vmul.f32 %v524, %v535
        %v539 = vlaneseq
        %v540 = vshrl.u32 %v539, 7
        %v541 = vsub.s32 0, %v540
        %v542 = vrot.slane %v159, %v541
        %v543 = vlaneseq
        %v544 = vshrl.u32 %v543, 7
        %v545 = vsub.s32 0, %v544
        %v546 = vrot.slane %v160, %v545
        %v547 = vmul.f32 %v537, %v542
        %v548 = vmul.f32 %v538, %v546
        %v551 = vrot.slane %v547, 2
        %v552 = vrot.slane %v548, 2
        %v555 = vadd.f32 %v501, %v551
        %v556 = vadd.f32 %v502, %v552
        %v557 = vadd.f32 %v503, %v551
        %v558 = vadd.f32 %v504, %v552
        %559 = vrot.lane.b32.xlu0 %v511, 16
        %v560 = vpop.permute.xlu0 %559
        %561 = vrot.lane.b32.xlu0 %v514, 16
        %v562 = vpop.permute.xlu0 %561
        %vm563 = vcmp.lt.s32.totalorder %v522, 16
        %v564 = vsel %vm563, %v560, %v562
        %v565 = vsel %vm563, %v562, %v560
        %566 = vset.pattern.permute.xlu0 1
        %567 = vperm.xlu0 %566, %v466
        %v568 = vpop.permute.xlu0 %567
        %569 = vset.pattern.permute.xlu0 1
        %570 = vperm.xlu0 %569, %v467
        %v571 = vpop.permute.xlu0 %570
        %v572 = vrot.slane %v568, 7
        %v573 = vrot.slane %v571, 7
        %v574 = vsel %vm532, %v572, %v573
        %v576 = vmul.f32 %v565, %v574
        %v577 = vmul.f32 %v564, %v574
        %v578 = vlaneseq
        %v579 = vshrl.u32 %v578, 7
        %v580 = vsub.s32 1, %v579
        %v581 = vrot.slane %v159, %v580
        %v582 = vlaneseq
        %v583 = vshrl.u32 %v582, 7
        %v584 = vsub.s32 1, %v583
        %v585 = vrot.slane %v160, %v584
        %v586 = vmul.f32 %v576, %v581
        %v587 = vmul.f32 %v577, %v585
        %v590 = vrot.slane %v586, 2
        %v591 = vrot.slane %v587, 2
        %v594 = vadd.f32 %v555, %v590
        %v595 = vadd.f32 %v556, %v591
        %v596 = vadd.f32 %v557, %v590
        %v597 = vadd.f32 %v558, %v591
        %598 = vrot.lane.b32.xlu0 %v511, 15
        %v599 = vpop.permute.xlu0 %598
        %600 = vrot.lane.b32.xlu0 %v514, 15
        %v601 = vpop.permute.xlu0 %600
        %vm602 = vcmp.lt.s32.totalorder %v522, 15
        %v603 = vsel %vm602, %v599, %v601
        %v604 = vsel %vm602, %v601, %v599
        %605 = vset.pattern.permute.xlu0 2
        %606 = vperm.xlu0 %605, %v466
        %v607 = vpop.permute.xlu0 %606
        %608 = vset.pattern.permute.xlu0 2
        %609 = vperm.xlu0 %608, %v467
        %v610 = vpop.permute.xlu0 %609
        %v611 = vrot.slane %v607, 7
        %v612 = vrot.slane %v610, 7
        %v613 = vsel %vm532, %v611, %v612
        %v615 = vmul.f32 %v604, %v613
        %v616 = vmul.f32 %v603, %v613
        %v617 = vlaneseq
        %v618 = vshrl.u32 %v617, 7
        %v619 = vsub.s32 2, %v618
        %v620 = vrot.slane %v159, %v619
        %v621 = vlaneseq
        %v622 = vshrl.u32 %v621, 7
        %v623 = vsub.s32 2, %v622
        %v624 = vrot.slane %v160, %v623
        %v625 = vmul.f32 %v615, %v620
        %v626 = vmul.f32 %v616, %v624
        %v629 = vrot.slane %v625, 2
        %v630 = vrot.slane %v626, 2
        %v633 = vadd.f32 %v594, %v629
        %v634 = vadd.f32 %v595, %v630
        %v635 = vadd.f32 %v596, %v629
        %v636 = vadd.f32 %v597, %v630
        %637 = vrot.lane.b32.xlu0 %v511, 1
        %v638 = vpop.permute.xlu0 %637
        %639 = vrot.lane.b32.xlu0 %v514, 1
        %v640 = vpop.permute.xlu0 %639
        %vm641 = vcmp.lt.s32.totalorder %v522, 1
        %v642 = vsel %vm641, %v638, %v640
        %v643 = vsel %vm641, %v640, %v638
        %644 = vset.pattern.permute.xlu0 3
        %645 = vperm.xlu0 %644, %v466
        %v646 = vpop.permute.xlu0 %645
        %647 = vset.pattern.permute.xlu0 3
        %648 = vperm.xlu0 %647, %v467
        %v649 = vpop.permute.xlu0 %648
        %v650 = vrot.slane %v646, 7
        %v651 = vrot.slane %v649, 7
        %v652 = vsel %vm532, %v650, %v651
        %v654 = vmul.f32 %v643, %v652
        %v655 = vmul.f32 %v642, %v652
        %v656 = vlaneseq
        %v657 = vshrl.u32 %v656, 7
        %v658 = vsub.s32 3, %v657
        %v659 = vrot.slane %v159, %v658
        %v660 = vlaneseq
        %v661 = vshrl.u32 %v660, 7
        %v662 = vsub.s32 3, %v661
        %v663 = vrot.slane %v160, %v662
        %v664 = vmul.f32 %v654, %v659
        %v665 = vmul.f32 %v655, %v663
        %v668 = vrot.slane %v664, 2
        %v669 = vrot.slane %v665, 2
        %v672 = vadd.f32 %v633, %v668
        %v673 = vadd.f32 %v634, %v669
        %v674 = vadd.f32 %v635, %v668
        %v675 = vadd.f32 %v636, %v669
        %676 = vrot.lane.b32.xlu0 %v511, 127
        %v677 = vpop.permute.xlu0 %676
        %678 = vrot.lane.b32.xlu0 %v514, 127
        %v679 = vpop.permute.xlu0 %678
        %vm680 = vcmp.lt.s32.totalorder %v522, 127
        %v681 = vsel %vm680, %v677, %v679
        %v682 = vsel %vm680, %v679, %v677
        %683 = vset.pattern.permute.xlu0 5
        %684 = vperm.xlu0 %683, %v466
        %v685 = vpop.permute.xlu0 %684
        %686 = vset.pattern.permute.xlu0 5
        %687 = vperm.xlu0 %686, %v467
        %v688 = vpop.permute.xlu0 %687
        %v689 = vrot.slane %v685, 7
        %v690 = vrot.slane %v688, 7
        %v691 = vsel %vm532, %v689, %v690
        %v693 = vmul.f32 %v681, %v691
        %v694 = vmul.f32 %v682, %v691
        %v695 = vlaneseq
        %v696 = vshrl.u32 %v695, 7
        %v697 = vsub.s32 5, %v696
        %v698 = vrot.slane %v159, %v697
        %v699 = vlaneseq
        %v700 = vshrl.u32 %v699, 7
        %v701 = vsub.s32 5, %v700
        %v702 = vrot.slane %v160, %v701
        %v703 = vmul.f32 %v693, %v698
        %v704 = vmul.f32 %v694, %v702
        %v707 = vrot.slane %v703, 2
        %v708 = vrot.slane %v704, 2
        %v711 = vadd.f32 %v672, %v707
        %v712 = vadd.f32 %v673, %v708
        %v713 = vadd.f32 %v674, %v707
        %v714 = vadd.f32 %v675, %v708
        %715 = vrot.lane.b32.xlu0 %v511, 113
        %v716 = vpop.permute.xlu0 %715
        %717 = vrot.lane.b32.xlu0 %v514, 113
        %v718 = vpop.permute.xlu0 %717
        %vm719 = vcmp.lt.s32.totalorder %v522, 113
        %v720 = vsel %vm719, %v716, %v718
        %v721 = vsel %vm719, %v718, %v716
        %722 = vset.pattern.permute.xlu0 6
        %723 = vperm.xlu0 %722, %v466
        %v724 = vpop.permute.xlu0 %723
        %725 = vset.pattern.permute.xlu0 6
        %726 = vperm.xlu0 %725, %v467
        %v727 = vpop.permute.xlu0 %726
        %v728 = vrot.slane %v724, 7
        %v729 = vrot.slane %v727, 7
        %v730 = vsel %vm532, %v728, %v729
        %v732 = vmul.f32 %v720, %v730
        %v733 = vmul.f32 %v721, %v730
        %v734 = vlaneseq
        %v735 = vshrl.u32 %v734, 7
        %v736 = vsub.s32 6, %v735
        %v737 = vrot.slane %v159, %v736
        %v738 = vlaneseq
        %v739 = vshrl.u32 %v738, 7
        %v740 = vsub.s32 6, %v739
        %v741 = vrot.slane %v160, %v740
        %v742 = vmul.f32 %v732, %v737
        %v743 = vmul.f32 %v733, %v741
        %v746 = vrot.slane %v742, 2
        %v747 = vrot.slane %v743, 2
        %v750 = vadd.f32 %v711, %v746
        %v751 = vadd.f32 %v712, %v747
        %v752 = vadd.f32 %v713, %v746
        %v753 = vadd.f32 %v714, %v747
        %754 = vrot.lane.b32.xlu0 %v511, 112
        %v755 = vpop.permute.xlu0 %754
        %756 = vrot.lane.b32.xlu0 %v514, 112
        %v757 = vpop.permute.xlu0 %756
        %vm758 = vcmp.lt.s32.totalorder %v522, 112
        %v759 = vsel %vm758, %v755, %v757
        %v760 = vsel %vm758, %v757, %v755
        %761 = vset.pattern.permute.xlu0 7
        %762 = vperm.xlu0 %761, %v466
        %v763 = vpop.permute.xlu0 %762
        %764 = vset.pattern.permute.xlu0 7
        %765 = vperm.xlu0 %764, %v467
        %v766 = vpop.permute.xlu0 %765
        %v767 = vrot.slane %v763, 7
        %v768 = vrot.slane %v766, 7
        %v769 = vsel %vm532, %v767, %v768
        %v771 = vmul.f32 %v759, %v769
        %v772 = vmul.f32 %v760, %v769
        %v773 = vlaneseq
        %v774 = vshrl.u32 %v773, 7
        %v775 = vsub.s32 7, %v774
        %v776 = vrot.slane %v159, %v775
        %v777 = vlaneseq
        %v778 = vshrl.u32 %v777, 7
        %v779 = vsub.s32 7, %v778
        %v780 = vrot.slane %v160, %v779
        %v781 = vmul.f32 %v771, %v776
        %v782 = vmul.f32 %v772, %v780
        %v785 = vrot.slane %v781, 2
        %v786 = vrot.slane %v782, 2
        %v789 = vadd.f32 %v750, %v785
        %v790 = vadd.f32 %v751, %v786
        %v791 = vadd.f32 %v752, %v785
        %v792 = vadd.f32 %v753, %v786
        %793 = vrot.lane.b32.xlu0 %v511, 111
        %v794 = vpop.permute.xlu0 %793
        %795 = vrot.lane.b32.xlu0 %v514, 111
        %v796 = vpop.permute.xlu0 %795
        %vm797 = vcmp.lt.s32.totalorder %v522, 111
        %v798 = vsel %vm797, %v794, %v796
        %v799 = vsel %vm797, %v796, %v794
        %800 = vset.pattern.permute.xlu0 8
        %801 = vperm.xlu0 %800, %v466
        %v802 = vpop.permute.xlu0 %801
        %803 = vset.pattern.permute.xlu0 8
        %804 = vperm.xlu0 %803, %v467
        %v805 = vpop.permute.xlu0 %804
        %v806 = vrot.slane %v802, 7
        %v807 = vrot.slane %v805, 7
        %v808 = vsel %vm532, %v806, %v807
        %v810 = vmul.f32 %v798, %v808
        %v811 = vmul.f32 %v799, %v808
        %v812 = vlaneseq
        %v813 = vshrl.u32 %v812, 7
        %v814 = vsub.s32 0, %v813
        %v815 = vrot.slane %v161, %v814
        %v816 = vlaneseq
        %v817 = vshrl.u32 %v816, 7
        %v818 = vsub.s32 0, %v817
        %v819 = vrot.slane %v162, %v818
        %v820 = vmul.f32 %v810, %v815
        %v821 = vmul.f32 %v811, %v819
        %v824 = vrot.slane %v820, 2
        %v825 = vrot.slane %v821, 2
        %v828 = vadd.f32 %v789, %v824
        %v829 = vadd.f32 %v790, %v825
        %v830 = vadd.f32 %v791, %v824
        %v831 = vadd.f32 %v792, %v825
        %v832 = vmax.f32 %v828, 0.0
        %v833 = vmax.f32 %v829, 0.0
        %v834 = vmax.f32 %v830, 0.0
        %v835 = vmax.f32 %v831, 0.0
        %v836 = vsel %vm390, %v832, 0.0
        %v837 = vsel %vm390, %v833, 0.0
        %v838 = vadd.f32 %v836, %v837
        %839 = vadd.xlane.f32.xlu0 %v838
        %v840 = vpop.xlane.xlu0 %839
        %v841 = vsel %vm396, %v834, 0.0
        %v842 = vsel %vm396, %v835, 0.0
        %v843 = vadd.f32 %v841, %v842
        %844 = vadd.xlane.f32.xlu0 %v843
        %v845 = vpop.xlane.xlu0 %844
        %v846 = vmul.f32 %v840, 0.00390625
        %v847 = vmul.f32 %v845, 0.00390625
        %v848 = vld [vmem:[#allocation2 + $0x70] sm:$0xf8]
        %v849 = vld [vmem:[#allocation2 + $0x80] sm:$0x7]
        %v850 = vld [vmem:[#allocation2 + $0x83] ss:$0 sm:$0xff]
        %vm851 = vcmask 1044480
        %v852 = vrot.slane %v402, 3
        %v853 = vrot.slane %v403, 3
        %v854 = vsel %vm851, %v852, %v853
        %v856 = vmul.f32 %v848, %v854
        %v858 = vrot.slane %v856, 3
        %v860 = vsel %vm183, %v858, 0.0
        %v861 = vrot.slane %v860, 4
        %v862 = vadd.f32 %v860, %v861
        %v863 = vrot.slane %v862, 2
        %v864 = vadd.f32 %v862, %v863
        %v865 = vrot.slane %v864, 1
        %v866 = vadd.f32 %v864, %v865
        %v867 = vadd.f32 %v850, %v866
        %v870 = vrot.slane %v846, 7
        %v871 = vrot.slane %v847, 7
        %v872 = vsel %vm532, %v870, %v871
        %v875 = vmul.f32 %v848, %v870
        %v876 = vmul.f32 %v849, %v872
        %v879 = vrot.slane %v875, 7
        %v880 = vrot.slane %v876, 7
        %v881 = vsel %vm532, %v879, %v880
        %v883 = vsel %vm183, %v881, 0.0
        %v884 = vrot.slane %v883, 4
        %v885 = vadd.f32 %v883, %v884
        %v886 = vrot.slane %v885, 2
        %v887 = vadd.f32 %v885, %v886
        %v888 = vrot.slane %v887, 1
        %v889 = vadd.f32 %v887, %v888
        %v890 = vadd.f32 %v867, %v889
        %v891 = vsub.f32 0.0, %v890
        %v892 = vmul.f32 %v891, 1.442695
        %v893 = vpow.pop %v892
        %v894 = vadd.f32 %v893, 1.0
        %v895 = vrcp.pop %v894
        %v896 = vmul.f32 1.0, %v895
        %v897 = vld [vmem:[#allocation2 + $0x80] sm:$0xf0]
        %v898 = vld [vmem:[#allocation2 + $0x90] sm:$0xf]
        %900 = vset.pattern.permute.xlu0 0
        %901 = vperm.xlu0 %900, %v896
        %v902 = vpop.permute.xlu0 %901
        %v904 = vmul.f32 %v902, %v897
        %905 = vset.pattern.permute.xlu0 1
        %906 = vperm.xlu0 %905, %v896
        %v907 = vpop.permute.xlu0 %906
        %v909 = vmul.f32 %v907, %v897
        %v911 = vrot.slane %v909, 2
        %v913 = vadd.f32 %v904, %v911
        %914 = vset.pattern.permute.xlu0 2
        %915 = vperm.xlu0 %914, %v896
        %v916 = vpop.permute.xlu0 %915
        %v918 = vmul.f32 %v916, %v898
        %v920 = vrot.slane %v918, 4
        %v922 = vadd.f32 %v913, %v920
        %923 = vset.pattern.permute.xlu0 3
        %924 = vperm.xlu0 %923, %v896
        %v925 = vpop.permute.xlu0 %924
        %v927 = vmul.f32 %v925, %v898
        %v929 = vrot.slane %v927, 6
        %v931 = vadd.f32 %v922, %v929
        %v932 = vld [vmem:[#allocation2 + $0x90] sm:$0x30]
        %934 = vset.pattern.permute.xlu0 0
        %935 = vperm.xlu0 %934, %v931
        %v936 = vpop.permute.xlu0 %935
        %v938 = vlaneseq
        %v939 = vshrl.u32 %v938, 7
        %v940 = vsub.s32 6, %v939
        %v941 = vrot.slane %v386, %v940
        %v942 = vlaneseq
        %v943 = vshrl.u32 %v942, 7
        %v944 = vsub.s32 6, %v943
        %v945 = vrot.slane %v387, %v944
        %v946 = vmul.f32 %v936, %v941
        %v947 = vmul.f32 %v936, %v945
        %949 = vset.pattern.permute.xlu0 0
        %950 = vperm.xlu0 %949, %v932
        %v951 = vpop.permute.xlu0 %950
        %v953 = vadd.f32 %v946, %v951
        %v954 = vadd.f32 %v947, %v951
        %955 = vset.pattern.permute.xlu0 1
        %956 = vperm.xlu0 %955, %v931
        %v957 = vpop.permute.xlu0 %956
        %v959 = vlaneseq
        %v960 = vshrl.u32 %v959, 7
        %v961 = vsub.s32 7, %v960
        %v962 = vrot.slane %v386, %v961
        %v963 = vlaneseq
        %v964 = vshrl.u32 %v963, 7
        %v965 = vsub.s32 7, %v964
        %v966 = vrot.slane %v387, %v965
        %v967 = vmul.f32 %v957, %v962
        %v968 = vmul.f32 %v957, %v966
        %v969 = vadd.f32 %v953, %v967
        %v970 = vadd.f32 %v954, %v968
        %971 = vset.pattern.permute.xlu0 2
        %972 = vperm.xlu0 %971, %v931
        %v973 = vpop.permute.xlu0 %972
        %v975 = vlaneseq
        %v976 = vshrl.u32 %v975, 7
        %v977 = vsub.s32 0, %v976
        %v978 = vrot.slane %v388, %v977
        %v979 = vlaneseq
        %v980 = vshrl.u32 %v979, 7
        %v981 = vsub.s32 0, %v980
        %v982 = vrot.slane %v389, %v981
        %v983 = vmul.f32 %v973, %v978
        %v984 = vmul.f32 %v973, %v982
        %v985 = vadd.f32 %v969, %v983
        %v986 = vadd.f32 %v970, %v984
        %987 = vset.pattern.permute.xlu0 3
        %988 = vperm.xlu0 %987, %v931
        %v989 = vpop.permute.xlu0 %988
        %v991 = vlaneseq
        %v992 = vshrl.u32 %v991, 7
        %v993 = vsub.s32 1, %v992
        %v994 = vrot.slane %v388, %v993
        %v995 = vlaneseq
        %v996 = vshrl.u32 %v995, 7
        %v997 = vsub.s32 1, %v996
        %v998 = vrot.slane %v389, %v997
        %v999 = vmul.f32 %v989, %v994
        %v1000 = vmul.f32 %v989, %v998
        %v1001 = vadd.f32 %v985, %v999
        %v1002 = vadd.f32 %v986, %v1000
        %1003 = vset.pattern.permute.xlu0 4
        %1004 = vperm.xlu0 %1003, %v931
        %v1005 = vpop.permute.xlu0 %1004
        %v1007 = vlaneseq
        %v1008 = vshrl.u32 %v1007, 7
        %v1009 = vsub.s32 6, %v1008
        %v1010 = vrot.slane %v832, %v1009
        %v1011 = vlaneseq
        %v1012 = vshrl.u32 %v1011, 7
        %v1013 = vsub.s32 6, %v1012
        %v1014 = vrot.slane %v833, %v1013
        %v1015 = vmul.f32 %v1005, %v1010
        %v1016 = vmul.f32 %v1005, %v1014
        %v1017 = vadd.f32 %v1001, %v1015
        %v1018 = vadd.f32 %v1002, %v1016
        %1019 = vset.pattern.permute.xlu0 5
        %1020 = vperm.xlu0 %1019, %v931
        %v1021 = vpop.permute.xlu0 %1020
        %v1023 = vlaneseq
        %v1024 = vshrl.u32 %v1023, 7
        %v1025 = vsub.s32 7, %v1024
        %v1026 = vrot.slane %v832, %v1025
        %v1027 = vlaneseq
        %v1028 = vshrl.u32 %v1027, 7
        %v1029 = vsub.s32 7, %v1028
        %v1030 = vrot.slane %v833, %v1029
        %v1031 = vmul.f32 %v1021, %v1026
        %v1032 = vmul.f32 %v1021, %v1030
        %v1033 = vadd.f32 %v1017, %v1031
        %v1034 = vadd.f32 %v1018, %v1032
        %1035 = vset.pattern.permute.xlu0 6
        %1036 = vperm.xlu0 %1035, %v931
        %v1037 = vpop.permute.xlu0 %1036
        %v1039 = vlaneseq
        %v1040 = vshrl.u32 %v1039, 7
        %v1041 = vsub.s32 0, %v1040
        %v1042 = vrot.slane %v834, %v1041
        %v1043 = vlaneseq
        %v1044 = vshrl.u32 %v1043, 7
        %v1045 = vsub.s32 0, %v1044
        %v1046 = vrot.slane %v835, %v1045
        %v1047 = vmul.f32 %v1037, %v1042
        %v1048 = vmul.f32 %v1037, %v1046
        %v1049 = vadd.f32 %v1033, %v1047
        %v1050 = vadd.f32 %v1034, %v1048
        %1051 = vset.pattern.permute.xlu0 7
        %1052 = vperm.xlu0 %1051, %v931
        %v1053 = vpop.permute.xlu0 %1052
        %v1055 = vlaneseq
        %v1056 = vshrl.u32 %v1055, 7
        %v1057 = vsub.s32 1, %v1056
        %v1058 = vrot.slane %v834, %v1057
        %v1059 = vlaneseq
        %v1060 = vshrl.u32 %v1059, 7
        %v1061 = vsub.s32 1, %v1060
        %v1062 = vrot.slane %v835, %v1061
        %v1063 = vmul.f32 %v1053, %v1058
        %v1064 = vmul.f32 %v1053, %v1062
        %v1065 = vadd.f32 %v1049, %v1063
        %v1066 = vadd.f32 %v1050, %v1064
        %vm1067 = vcmask 1045508
        %v1068 = vsel %vm1067, %v1065, 0.0
        %v1069 = vsel %vm1067, %v1066, 0.0
        %v1070 = vadd.f32 %v1068, %v1069
        %1071 = vadd.xlane.f32.xlu0 %v1070
        %v1072 = vpop.xlane.xlu0 %1071
        %v1073 = vmul.f32 %v1072, 0.00390625
        %v1074 = vld [vmem:[#allocation2 + $0x90] sm:$0xc0]
        %v1075 = vld [vmem:[#allocation2 + $0xa0] ss:$0 sm:$0xff]
        %v1077 = vrot.slane %v1073, 6
        %v1079 = vmul.f32 %v1074, %v1077
        %v1081 = vrot.slane %v1079, 6
        %vm1083 = vcmask 25600
        %v1084 = vsel %vm1083, %v1081, 0.0
        %v1085 = vrot.slane %v1084, 4
        %v1086 = vadd.f32 %v1084, %v1085
        %v1087 = vrot.slane %v1086, 2
        %v1088 = vadd.f32 %v1086, %v1087
        %v1089 = vrot.slane %v1088, 1
        %v1090 = vadd.f32 %v1088, %v1089
        %v1091 = vadd.f32 %v1075, %v1090
        %v1092 = vsub.f32 0.0, %v1091
        %v1093 = vmul.f32 %v1092, 1.442695
        %v1094 = vpow.pop %v1093
        %v1095 = vadd.f32 %v1094, 1.0
        %v1096 = vrcp.pop %v1095
        %v1097 = vmul.f32 1.0, %v1096
        %v1098 = vld [vmem:[#allocation2 + $0xa0] sm:$0xfe]
        %v1099 = vld [vmem:[#allocation2 + $0xb0] sm:$0x1]
        %1101 = vset.pattern.permute.xlu0 0
        %1102 = vperm.xlu0 %1101, %v1097
        %v1103 = vpop.permute.xlu0 %1102
        %v1105 = vmul.f32 %v1103, %v1098
        %1106 = vset.pattern.permute.xlu0 1
        %1107 = vperm.xlu0 %1106, %v1097
        %v1108 = vpop.permute.xlu0 %1107
        %v1110 = vmul.f32 %v1108, %v1098
        %v1112 = vrot.slane %v1110, 2
        %v1114 = vadd.f32 %v1105, %v1112
        %1115 = vset.pattern.permute.xlu0 2
        %1116 = vperm.xlu0 %1115, %v1097
        %v1117 = vpop.permute.xlu0 %1116
        %v1119 = vmul.f32 %v1117, %v1098
        %v1121 = vrot.slane %v1119, 4
        %v1123 = vadd.f32 %v1114, %v1121
        %1124 = vset.pattern.permute.xlu0 3
        %1125 = vperm.xlu0 %1124, %v1097
        %v1126 = vpop.permute.xlu0 %1125
        %v1128 = vmul.f32 %v1126, %v1098
        %v1129 = vmul.f32 %v1126, %v1099
        %v1132 = vrot.slane %v1128, 6
        %v1133 = vrot.slane %v1129, 6
        %v1134 = vsel %vm396, %v1132, %v1133
        %v1136 = vadd.f32 %v1123, %v1134
        %v1137 = vld [vmem:[#allocation2 + $0xb0] sm:$0x6]
        %1139 = vset.pattern.permute.xlu0 4
        %1140 = vperm.xlu0 %1139, %v1136
        %v1141 = vpop.permute.xlu0 %1140
        %v1142 = vrot.slane %v1141, 5
        %v1144 = vmul.f32 %v1065, %v1142
        %v1145 = vmul.f32 %v1066, %v1142
        %1147 = vset.pattern.permute.xlu0 0
        %1148 = vperm.xlu0 %1147, %v1137
        %v1149 = vpop.permute.xlu0 %1148
        %v1150 = vrot.slane %v1149, 5
        %v1152 = vadd.f32 %v1144, %v1150
        %v1153 = vadd.f32 %v1145, %v1150
        %v1156 = vrot.slane %v1065, 4
        %v1157 = vrot.slane %v1066, 4
        %1160 = vrot.lane.b32.xlu0 %v1156, 17
        %v1161 = vpop.permute.xlu0 %1160
        %1162 = vrot.lane.b32.xlu0 %v1157, 17
        %v1163 = vpop.permute.xlu0 %1162
        %v1164 = vsel %vm523, %v1161, %v1163
        %v1165 = vsel %vm523, %v1163, %v1161
        %1166 = vset.pattern.permute.xlu0 0
        %1167 = vperm.xlu0 %1166, %v1136
        %v1168 = vpop.permute.xlu0 %1167
        %v1169 = vrot.slane %v1168, 1
        %v1171 = vmul.f32 %v1165, %v1169
        %v1172 = vmul.f32 %v1164, %v1169
        %v1173 = vmul.f32 %v1171, %v542
        %v1174 = vmul.f32 %v1172, %v546
        %v1177 = vrot.slane %v1173, 4
        %v1178 = vrot.slane %v1174, 4
        %v1181 = vadd.f32 %v1152, %v1177
        %v1182 = vadd.f32 %v1153, %v1178
        %1183 = vrot.lane.b32.xlu0 %v1156, 16
        %v1184 = vpop.permute.xlu0 %1183
        %1185 = vrot.lane.b32.xlu0 %v1157, 16
        %v1186 = vpop.permute.xlu0 %1185
        %v1187 = vsel %vm563, %v1184, %v1186
        %v1188 = vsel %vm563, %v1186, %v1184
        %1189 = vset.pattern.permute.xlu0 1
        %1190 = vperm.xlu0 %1189, %v1136
        %v1191 = vpop.permute.xlu0 %1190
        %v1192 = vrot.slane %v1191, 1
        %v1194 = vmul.f32 %v1188, %v1192
        %v1195 = vmul.f32 %v1187, %v1192
        %v1196 = vmul.f32 %v1194, %v581
        %v1197 = vmul.f32 %v1195, %v585
        %v1200 = vrot.slane %v1196, 4
        %v1201 = vrot.slane %v1197, 4
        %v1204 = vadd.f32 %v1181, %v1200
        %v1205 = vadd.f32 %v1182, %v1201
        %1206 = vrot.lane.b32.xlu0 %v1156, 15
        %v1207 = vpop.permute.xlu0 %1206
        %1208 = vrot.lane.b32.xlu0 %v1157, 15
        %v1209 = vpop.permute.xlu0 %1208
        %v1210 = vsel %vm602, %v1207, %v1209
        %v1211 = vsel %vm602, %v1209, %v1207
        %1212 = vset.pattern.permute.xlu0 2
        %1213 = vperm.xlu0 %1212, %v1136
        %v1214 = vpop.permute.xlu0 %1213
        %v1215 = vrot.slane %v1214, 1
        %v1217 = vmul.f32 %v1211, %v1215
        %v1218 = vmul.f32 %v1210, %v1215
        %v1219 = vmul.f32 %v1217, %v620
        %v1220 = vmul.f32 %v1218, %v624
        %v1223 = vrot.slane %v1219, 4
        %v1224 = vrot.slane %v1220, 4
        %v1227 = vadd.f32 %v1204, %v1223
        %v1228 = vadd.f32 %v1205, %v1224
        %1229 = vrot.lane.b32.xlu0 %v1156, 1
        %v1230 = vpop.permute.xlu0 %1229
        %1231 = vrot.lane.b32.xlu0 %v1157, 1
        %v1232 = vpop.permute.xlu0 %1231
        %v1233 = vsel %vm641, %v1230, %v1232
        %v1234 = vsel %vm641, %v1232, %v1230
        %1235 = vset.pattern.permute.xlu0 3
        %1236 = vperm.xlu0 %1235, %v1136
        %v1237 = vpop.permute.xlu0 %1236
        %v1238 = vrot.slane %v1237, 1
        %v1240 = vmul.f32 %v1234, %v1238
        %v1241 = vmul.f32 %v1233, %v1238
        %v1242 = vmul.f32 %v1240, %v659
        %v1243 = vmul.f32 %v1241, %v663
        %v1246 = vrot.slane %v1242, 4
        %v1247 = vrot.slane %v1243, 4
        %v1250 = vadd.f32 %v1227, %v1246
        %v1251 = vadd.f32 %v1228, %v1247
        %1252 = vrot.lane.b32.xlu0 %v1156, 127
        %v1253 = vpop.permute.xlu0 %1252
        %1254 = vrot.lane.b32.xlu0 %v1157, 127
        %v1255 = vpop.permute.xlu0 %1254
        %v1256 = vsel %vm680, %v1253, %v1255
        %v1257 = vsel %vm680, %v1255, %v1253
        %1258 = vset.pattern.permute.xlu0 5
        %1259 = vperm.xlu0 %1258, %v1136
        %v1260 = vpop.permute.xlu0 %1259
        %v1261 = vrot.slane %v1260, 1
        %v1263 = vmul.f32 %v1256, %v1261
        %v1264 = vmul.f32 %v1257, %v1261
        %v1265 = vmul.f32 %v1263, %v698
        %v1266 = vmul.f32 %v1264, %v702
        %v1269 = vrot.slane %v1265, 4
        %v1270 = vrot.slane %v1266, 4
        %v1273 = vadd.f32 %v1250, %v1269
        %v1274 = vadd.f32 %v1251, %v1270
        %1275 = vrot.lane.b32.xlu0 %v1156, 113
        %v1276 = vpop.permute.xlu0 %1275
        %1277 = vrot.lane.b32.xlu0 %v1157, 113
        %v1278 = vpop.permute.xlu0 %1277
        %v1279 = vsel %vm719, %v1276, %v1278
        %v1280 = vsel %vm719, %v1278, %v1276
        %1281 = vset.pattern.permute.xlu0 6
        %1282 = vperm.xlu0 %1281, %v1136
        %v1283 = vpop.permute.xlu0 %1282
        %v1284 = vrot.slane %v1283, 1
        %v1286 = vmul.f32 %v1279, %v1284
        %v1287 = vmul.f32 %v1280, %v1284
        %v1288 = vmul.f32 %v1286, %v737
        %v1289 = vmul.f32 %v1287, %v741
        %v1292 = vrot.slane %v1288, 4
        %v1293 = vrot.slane %v1289, 4
        %v1296 = vadd.f32 %v1273, %v1292
        %v1297 = vadd.f32 %v1274, %v1293
        %1298 = vrot.lane.b32.xlu0 %v1156, 112
        %v1299 = vpop.permute.xlu0 %1298
        %1300 = vrot.lane.b32.xlu0 %v1157, 112
        %v1301 = vpop.permute.xlu0 %1300
        %v1302 = vsel %vm758, %v1299, %v1301
        %v1303 = vsel %vm758, %v1301, %v1299
        %1304 = vset.pattern.permute.xlu0 7
        %1305 = vperm.xlu0 %1304, %v1136
        %v1306 = vpop.permute.xlu0 %1305
        %v1307 = vrot.slane %v1306, 1
        %v1309 = vmul.f32 %v1302, %v1307
        %v1310 = vmul.f32 %v1303, %v1307
        %v1311 = vmul.f32 %v1309, %v776
        %v1312 = vmul.f32 %v1310, %v780
        %v1315 = vrot.slane %v1311, 4
        %v1316 = vrot.slane %v1312, 4
        %v1319 = vadd.f32 %v1296, %v1315
        %v1320 = vadd.f32 %v1297, %v1316
        %1321 = vrot.lane.b32.xlu0 %v1156, 111
        %v1322 = vpop.permute.xlu0 %1321
        %1323 = vrot.lane.b32.xlu0 %v1157, 111
        %v1324 = vpop.permute.xlu0 %1323
        %v1325 = vsel %vm797, %v1322, %v1324
        %v1326 = vsel %vm797, %v1324, %v1322
        %1327 = vset.pattern.permute.xlu0 8
        %1328 = vperm.xlu0 %1327, %v1136
        %v1329 = vpop.permute.xlu0 %1328
        %v1330 = vrot.slane %v1329, 1
        %v1332 = vmul.f32 %v1325, %v1330
        %v1333 = vmul.f32 %v1326, %v1330
        %v1334 = vmul.f32 %v1332, %v815
        %v1335 = vmul.f32 %v1333, %v819
        %v1338 = vrot.slane %v1334, 4
        %v1339 = vrot.slane %v1335, 4
        %v1342 = vadd.f32 %v1319, %v1338
        %v1343 = vadd.f32 %v1320, %v1339
        %v1346 = vrot.slane %v1342, 2
        %v1347 = vrot.slane %v1343, 2
        %v1350 = vsel %vm396, %v1156, %v1346
        %v1351 = vsel %vm396, %v1157, %v1347
        %v1354 = vcombine.low %v1350, %v1351
        %v1356 = vadd.f32 %v163, %v1354
        %1357 = vst [vmem:[%s158] sm:$0xff] %v1356
        %p1358 = scmp.lt.s32.totalorder %s14, 1
        %s1359 = scalar_select %p1358, %s14, 1
        %s1360 = smul.addr %s1359, 2
        %s1361 = smul.addr %s1360, 4
        %s1362 = scalar_lea.vmem %s2, %s1361
        // Predicated region
        $region33: #{fwd.1} parent=27 // pred_check
          %p1363 = pneg %p79
        $region34: #{fwd.1} parent=27 // pred_check_branch
          %1365 = sbr.rel (%p1363) target = $region36
        $region35: #{fwd.1} parent=27 // pred_region
          _
        $region36: #{fwd.1} parent=27 // pred_fallthru
          _
      $region28: #{fwd.1} parent=5 // pred_fallthru
        _
      %p1366 = scmp.le.s32.totalorder 2, %s9
      // Predicated region
      $region37: #{fwd.1} parent=5 // pred_check
        %p1367 = pneg %p1366
      $region38: #{fwd.1} parent=5 // pred_check_branch
        %1369 = sbr.rel (%p1367) target = $region40
      $region39: #{fwd.1} parent=5 // pred_region
        %s1370 = ssub.s32 %s9, 2
        // Predicated region
        $region41: #{fwd.1} parent=39 // pred_check
          %p1371 = pneg %p85
        $region42: #{fwd.1} parent=39 // pred_check_branch
          %1373 = sbr.rel (%p1371) target = $region44
        $region43: #{fwd.1} parent=39 // pred_region
          %p1374 = scmp.lt.s32.totalorder %s15, 1
          %s1375 = scalar_select %p1374, %s15, 1
          %s1376 = smul.addr %s1375, 2
          %s1377 = smul.addr %s1376, 4
          %s1378 = scalar_lea.vmem %s2, %s1377
        $region44: #{fwd.1} parent=39 // pred_fallthru
          _
      $region40: #{fwd.1} parent=5 // pred_fallthru
        _
    $region6: #{fwd.1} parent=1 // loop_footer
      %s13 = sadd.s32 1, %s9
    $region7: #{fwd.1} parent=1 // loop_footer_branch
      %8 = sbr.rel target = $region3
    $region8: #{fwd.1} parent=1 // loop_exit
      _
    %1379 = vsyncpa [#allocation3], 1
    %s1380 = scalar_lea.sflag [#allocation3], 1
    %1381 = vsyncpa %s1380, 1

</llo_original>
